<compile_context>
chip_gen: v6e
topology: v6e:2x2x1
jax: 0.10.0
libtpu: 0.0.40
codegen_flags: <defaults>
</compile_context>

<pallas_src>
import functools
import math
import numpy as np

import jax
import jax.numpy as jnp
from jax.experimental import pallas as pl
from jax.experimental.pallas import tpu as pltpu


# --------------------------------------------------------------------------
# Relative-position index (exact replica of the PyTorch buffer computation).
# --------------------------------------------------------------------------
@functools.lru_cache(maxsize=None)
def _relative_index_np(ih, iw):
    coords = np.stack(np.meshgrid(np.arange(ih), np.arange(iw), indexing="ij"))
    coords = coords.reshape(2, -1)                              # (2, N)
    rel = coords[:, :, None] - coords[:, None, :]               # (2, N, N)
    rel[0] += ih - 1
    rel[1] += iw - 1
    rel[0] *= 2 * iw - 1
    rel = np.transpose(rel, (1, 2, 0))                          # (N, N, 2)
    return rel.sum(-1).reshape(-1).astype(np.int32)             # (N*N,)


def _relative_index(ih, iw):
    return jnp.asarray(_relative_index_np(ih, iw))


def _pick_q_tile(n):
    """Query-row tile: full N when small, else the largest MXU-friendly divisor."""
    if n <= 256:
        return n
    for t in (256, 128, 64, 32, 16):
        if n % t == 0:
            return t
    return n


def _vmem_limit_bytes(N, C, tq, heads, d, inner, oup, hidden):
    """Rough VMEM footprint; only raise the scoped limit when actually needed."""
    bf, f4 = 2, 4
    pad = lambda r, c, e: ((r + 7) // 8 * 8) * ((c + 127) // 128 * 128) * e
    blocks = 2 * pad(N, C, f4) + 2 * heads * pad(tq, N, bf) + 2 * pad(tq, oup, f4)
    weights = 2 * (pad(C, inner, bf) + pad(C, 2 * inner, bf) + pad(inner, oup, bf)
                   + pad(oup, hidden, bf) + pad(hidden, oup, bf))
    scratch = (pad(N, C, bf) + 2 * heads * pad(N, d, bf) + 2 * heads * pad(tq, d, bf))
    live = 3 * pad(tq, N, f4) + 2 * pad(N, 2 * inner, f4) + 2 * pad(tq, max(hidden, inner), f4)
    est = blocks + weights + scratch + live
    if est <= 24 * (1 << 20):
        return None                      # default scoped VMEM is plenty
    try:
        cap = int(pltpu.get_tpu_info().vmem_capacity_bytes)
    except Exception:                    # trace-time query only; conservative default
        cap = 64 * (1 << 20)
    return int(min(0.9 * cap, max(32 * (1 << 20), 1.3 * est)))


# --------------------------------------------------------------------------
# Fused kernel: PreNorm-Attention + residual + PreNorm-FF + residual
# --------------------------------------------------------------------------
def _make_fused_kernel(heads, dim_head):
    f32, bf16 = jnp.float32, jnp.bfloat16
    inner = heads * dim_head
    d = dim_head

    def _ln(v, w, b):
        mu = jnp.mean(v, axis=-1, keepdims=True)
        var = jnp.mean((v - mu) ** 2, axis=-1, keepdims=True)
        return (v - mu) * jax.lax.rsqrt(var + 1e-5) * w + b

    def kernel(x_ref, ln1w_ref, ln1b_ref, wq_ref, wkv_ref, wo_ref, bo_ref,
               bias_ref, ln2w_ref, ln2b_ref, w1_ref, b1_ref, w2_ref, b2_ref,
               o_ref,
               xn_sc, k_sc, v_sc, q_sc, oh_sc):
        qt = pl.program_id(1)
        tq = o_ref.shape[1]

        # ---- once per batch: LN1 + fused K/V projection, cached in VMEM ----
        @pl.when(qt == 0)
        def _():
            x_full = x_ref[0]                                       # (N, C) f32
            xn = _ln(x_full, ln1w_ref[...], ln1b_ref[...]).astype(bf16)
            xn_sc[...] = xn
            # ONE matmul for K and V over all heads (contraction = C).
            kv = jnp.dot(xn, wkv_ref[...], preferred_element_type=f32).astype(bf16)
            for h in range(heads):                                  # static scatter -> head-major
                k_sc[h] = kv[:, h * d:(h + 1) * d]
                v_sc[h] = kv[:, inner + h * d:inner + (h + 1) * d]

        # ---- per query tile ----
        q_start = pl.multiple_of(qt * tq, tq)
        xn_q = xn_sc[pl.ds(q_start, tq), :]                         # (tq, C) bf16 (cached LN1)
        # ONE matmul for Q over all heads (scale folded into wq in the wrapper).
        q_all = jnp.dot(xn_q, wq_ref[...], preferred_element_type=f32).astype(bf16)
        for h in range(heads):                                      # static scatter -> head-major
            q_sc[h] = q_all[:, h * d:(h + 1) * d]

        # Per-head attention; fori_loop bounds live (tq, N) intermediates to one head.
        def _head(h, carry):
            s = jax.lax.dot_general(q_sc[h], k_sc[h],
                                    (((1,), (1,)), ((), ())),
                                    preferred_element_type=f32)      # (tq, N)
            s = s + bias_ref[h].astype(f32)                          # rel-pos bias
            s = s - jnp.max(s, axis=-1, keepdims=True)
            p = jnp.exp(s)
            inv = pl.reciprocal(jnp.sum(p, axis=-1, keepdims=True), approx=True)
            attn = (p * inv).astype(bf16)
            oh_sc[h] = jnp.dot(attn, v_sc[h], preferred_element_type=f32).astype(bf16)
            return carry

        jax.lax.fori_loop(0, heads, _head, 0)

        # ONE fused output projection over concatenated heads (contraction = inner).
        oh_cat = jnp.concatenate([oh_sc[h] for h in range(heads)], axis=-1)   # (tq, inner)
        attn_out = jnp.dot(oh_cat, wo_ref[...], preferred_element_type=f32)   # (tq, oup)

        # to_out bias + attention residual (residual sliced from the resident block)
        x_tile = x_ref[0, pl.ds(q_start, tq), :]                    # (tq, C) f32
        y = x_tile + attn_out + bo_ref[...]

        # PreNorm LN2 + FeedForward (Linear -> exact GELU -> Linear) + residual
        yn = _ln(y, ln2w_ref[...], ln2b_ref[...]).astype(bf16)
        hdd = jnp.dot(yn, w1_ref[...], preferred_element_type=f32) + b1_ref[...]
        hdd = 0.5 * hdd * (1.0 + jax.lax.erf(hdd * (1.0 / math.sqrt(2.0))))
        z = jnp.dot(hdd.astype(bf16), w2_ref[...], preferred_element_type=f32) + b2_ref[...]

        o_ref[0] = y + z

    return kernel


# --------------------------------------------------------------------------
# Wrapper (pure; jit-friendly, no eager execution inside)
# --------------------------------------------------------------------------
def transformer_forward(x_nchw, params, image_size, heads=8, dim_head=32):
    B, C, H, W = x_nchw.shape
    ih, iw = image_size
    assert (H, W) == (ih, iw)
    N = ih * iw
    inner = heads * dim_head
    scale = dim_head ** -0.5
    oup = params["wo"].shape[0]
    hidden = params["w1"].shape[0]
    assert oup == C, "non-downsample path requires inp == oup for the residual"

    tq = _pick_q_tile(N)
    nq = N // tq

    # NCHW -> (B, N, C)   [glue]
    x_seq = jnp.transpose(x_nchw, (0, 2, 3, 1)).reshape(B, N, C)

    # relative bias gather from the table -> (heads, N, N), bf16   [glue]
    rel_idx = _relative_index(ih, iw)                               # (N*N,)
    bias = params["rel_table"][rel_idx]                             # (N*N, heads)
    bias = bias.reshape(N, N, heads).transpose(2, 0, 1).astype(jnp.bfloat16)

    # Fused projection weights (bf16 MXU operands, f32 accumulation in-kernel).
    wqkv = params["wqkv"]                                           # (3*inner, C)
    wq_f = (wqkv[0 * inner:1 * inner].T * scale).astype(jnp.bfloat16)   # (C, inner), scale folded
    wkv_f = wqkv[1 * inner:3 * inner].T.astype(jnp.bfloat16)            # (C, 2*inner)
    wo_t = params["wo"].T.astype(jnp.bfloat16)                          # (inner, oup)

    ln1w = params["ln1_w"].reshape(1, C)
    ln1b = params["ln1_b"].reshape(1, C)
    bo = params["bo"].reshape(1, oup)
    ln2w = params["ln2_w"].reshape(1, oup)
    ln2b = params["ln2_b"].reshape(1, oup)
    w1t = params["w1"].T.astype(jnp.bfloat16)                       # (oup, hidden)
    b1 = params["b1"].reshape(1, hidden)
    w2t = params["w2"].T.astype(jnp.bfloat16)                       # (hidden, oup)
    b2 = params["b2"].reshape(1, oup)

    kernel = _make_fused_kernel(heads, dim_head)

    def winv(shape):                                                # grid-invariant operand
        return pl.BlockSpec(shape, lambda b, qt, _s=len(shape): (0,) * _s)

    in_specs = [
        pl.BlockSpec((1, N, C), lambda b, qt: (b, 0, 0)),           # x full sequence per batch
        winv((1, C)), winv((1, C)),                                 # LN1 w, b
        winv((C, inner)),                                           # wq (scale folded)
        winv((C, 2 * inner)),                                       # wkv
        winv((inner, oup)),                                         # wo
        winv((1, oup)),                                             # bo
        pl.BlockSpec((heads, tq, N), lambda b, qt: (0, qt, 0)),     # rel-pos bias slab
        winv((1, oup)), winv((1, oup)),                             # LN2 w, b
        winv((oup, hidden)), winv((1, hidden)),                     # ff w1, b1
        winv((hidden, oup)), winv((1, oup)),                        # ff w2, b2
    ]

    scratch_shapes = [
        pltpu.VMEM((N, C), jnp.bfloat16),                           # cached LN1(x)
        pltpu.VMEM((heads, N, dim_head), jnp.bfloat16),             # cached K (head-major)
        pltpu.VMEM((heads, N, dim_head), jnp.bfloat16),             # cached V (head-major)
        pltpu.VMEM((heads, tq, dim_head), jnp.bfloat16),            # per-tile Q (head-major)
        pltpu.VMEM((heads, tq, dim_head), jnp.bfloat16),            # per-tile attn outputs
    ]

    z_seq = pl.pallas_call(
        kernel,
        out_shape=jax.ShapeDtypeStruct((B, N, oup), jnp.float32),
        grid=(B, nq),
        in_specs=in_specs,
        out_specs=pl.BlockSpec((1, tq, oup), lambda b, qt: (b, qt, 0)),
        scratch_shapes=scratch_shapes,
        compiler_params=pltpu.CompilerParams(
            dimension_semantics=("parallel", "arbitrary"),
            vmem_limit_bytes=_vmem_limit_bytes(
                N, C, tq, heads, dim_head, inner, oup, hidden)),
    )(x_seq, ln1w, ln1b, wq_f, wkv_f, wo_t, bo, bias,
      ln2w, ln2b, w1t, b1, w2t, b2)

    # (B, N, C) -> NCHW   [glue]
    return jnp.transpose(z_seq.reshape(B, ih, iw, oup), (0, 3, 1, 2))


# --------------------------------------------------------------------------
# Deterministic parameter init (shapes from the PyTorch __init__)
# --------------------------------------------------------------------------
def init_params(key, inp, oup, image_size, heads, dim_head):
    ih, iw = image_size
    inner = heads * dim_head
    hidden = int(inp * 4)
    ks = jax.random.split(key, 12)

    def n(k, shape, s=0.05):
        return s * jax.random.normal(k, shape, jnp.float32)

    return dict(
        rel_table=n(ks[0], ((2 * ih - 1) * (2 * iw - 1), heads), 0.02),
        ln1_w=1.0 + n(ks[1], (inp,), 0.02),
        ln1_b=n(ks[2], (inp,), 0.02),
        wqkv=n(ks[3], (3 * inner, inp)),          # to_qkv.weight  (no bias)
        wo=n(ks[4], (oup, inner)),                # to_out[0].weight
        bo=n(ks[5], (oup,), 0.02),                # to_out[0].bias
        ln2_w=1.0 + n(ks[6], (oup,), 0.02),
        ln2_b=n(ks[7], (oup,), 0.02),
        w1=n(ks[8], (hidden, oup)),               # ff.net[0].weight
        b1=n(ks[9], (hidden,), 0.02),
        w2=n(ks[10], (oup, hidden)),              # ff.net[3].weight
        b2=n(ks[11], (oup,), 0.02),
    )


# --------------------------------------------------------------------------
# Pure-JAX reference (mirrors the PyTorch forward, f32) for validation
# --------------------------------------------------------------------------
def reference_forward(x_nchw, params, image_size, heads, dim_head):
    B, C, H, W = x_nchw.shape
    ih, iw = image_size
    N = ih * iw
    inner = heads * dim_head
    scale = dim_head ** -0.5
    x = jnp.transpose(x_nchw, (0, 2, 3, 1)).reshape(B, N, C)

    def ln(y, w, b):
        mu = y.mean(-1, keepdims=True)
        var = ((y - mu) ** 2).mean(-1, keepdims=True)
        return (y - mu) / jnp.sqrt(var + 1e-5) * w + b

    xn = ln(x, params["ln1_w"], params["ln1_b"])
    qkv = xn @ params["wqkv"].T
    q, k, v = jnp.split(qkv, 3, axis=-1)
    to_heads = lambda t: t.reshape(B, N, heads, dim_head).transpose(0, 2, 1, 3)
    q, k, v = map(to_heads, (q, k, v))
    dots = jnp.einsum("bhnd,bhmd->bhnm", q, k) * scale
    rel_idx = _relative_index(ih, iw)
    bias = params["rel_table"][rel_idx].reshape(N, N, heads).transpose(2, 0, 1)
    attn = jax.nn.softmax(dots + bias[None], axis=-1)
    out = jnp.einsum("bhnm,bhmd->bhnd", attn, v).transpose(0, 2, 1, 3).reshape(B, N, inner)
    x = x + (out @ params["wo"].T + params["bo"])

    xn = ln(x, params["ln2_w"], params["ln2_b"])
    h = jax.nn.gelu(xn @ params["w1"].T + params["b1"], approximate=False)
    x = x + (h @ params["w2"].T + params["b2"])
    return jnp.transpose(x.reshape(B, ih, iw, C), (0, 3, 1, 2))


# --------------------------------------------------------------------------
if __name__ == "__main__":
    B, inp, oup = 2, 32, 32
    image_size = (8, 8)
    heads, dim_head = 4, 8

    key = jax.random.PRNGKey(0)
    kx, kp = jax.random.split(key)
    x = jax.random.normal(kx, (B, inp, image_size[0], image_size[1]), jnp.float32)
    params = init_params(kp, inp, oup, image_size, heads, dim_head)

    fwd = jax.jit(functools.partial(transformer_forward, image_size=image_size,
                                    heads=heads, dim_head=dim_head))
    y = jax.block_until_ready(fwd(x, params))

    y_ref = reference_forward(x, params, image_size, heads, dim_head)
    assert y.shape == (B, oup, image_size[0], image_size[1])
    # bf16 MXU operands + approx reciprocal => looser tolerance than pure f32.
    err = float(jnp.max(jnp.abs(y - y_ref)))
    assert err < 2e-2, f"mismatch vs reference: {err}"

    print("KERNEL_OK")
</pallas_src>

<mosaic_0001>
module attributes {stable_mosaic.version = 11 : i64} {
  func.func @kernel(%arg0: i32, %arg1: i32, %arg2: memref<1x64x32xf32, #tpu.memory_space<vmem>>, %arg3: memref<1x32xf32, #tpu.memory_space<vmem>>, %arg4: memref<1x32xf32, #tpu.memory_space<vmem>>, %arg5: memref<32x32xbf16, #tpu.memory_space<vmem>>, %arg6: memref<32x64xbf16, #tpu.memory_space<vmem>>, %arg7: memref<32x32xbf16, #tpu.memory_space<vmem>>, %arg8: memref<1x32xf32, #tpu.memory_space<vmem>>, %arg9: memref<4x64x64xbf16, #tpu.memory_space<vmem>>, %arg10: memref<1x32xf32, #tpu.memory_space<vmem>>, %arg11: memref<1x32xf32, #tpu.memory_space<vmem>>, %arg12: memref<32x128xbf16, #tpu.memory_space<vmem>>, %arg13: memref<1x128xf32, #tpu.memory_space<vmem>>, %arg14: memref<128x32xbf16, #tpu.memory_space<vmem>>, %arg15: memref<1x32xf32, #tpu.memory_space<vmem>>, %arg16: memref<1x64x32xf32, #tpu.memory_space<vmem>>, %arg17: memref<64x32xbf16, #tpu.memory_space<vmem>>, %arg18: memref<4x64x8xbf16, #tpu.memory_space<vmem>>, %arg19: memref<4x64x8xbf16, #tpu.memory_space<vmem>>, %arg20: memref<4x64x8xbf16, #tpu.memory_space<vmem>>, %arg21: memref<4x64x8xbf16, #tpu.memory_space<vmem>>) attributes {dimension_semantics = [#tpu.dimension_semantics<parallel>, #tpu.dimension_semantics<arbitrary>], iteration_bounds = array<i64: 2, 1>, scalar_prefetch = 0 : i64, scratch_operands = 5 : i64, tpu.core_type = #tpu.core_type<tc>, window_params = [{transform_indices = @transform_0, window_bounds = array<i64: 1, 64, 32>}, {pipeline_mode = #tpu.pipeline_mode<synchronous>, transform_indices = @transform_1, window_bounds = array<i64: 1, 32>}, {pipeline_mode = #tpu.pipeline_mode<synchronous>, transform_indices = @transform_2, window_bounds = array<i64: 1, 32>}, {pipeline_mode = #tpu.pipeline_mode<synchronous>, transform_indices = @transform_3, window_bounds = array<i64: 32, 32>}, {pipeline_mode = #tpu.pipeline_mode<synchronous>, transform_indices = @transform_4, window_bounds = array<i64: 32, 64>}, {pipeline_mode = #tpu.pipeline_mode<synchronous>, transform_indices = @transform_5, window_bounds = array<i64: 32, 32>}, {pipeline_mode = #tpu.pipeline_mode<synchronous>, transform_indices = @transform_6, window_bounds = array<i64: 1, 32>}, {transform_indices = @transform_7, window_bounds = array<i64: 4, 64, 64>}, {pipeline_mode = #tpu.pipeline_mode<synchronous>, transform_indices = @transform_8, window_bounds = array<i64: 1, 32>}, {pipeline_mode = #tpu.pipeline_mode<synchronous>, transform_indices = @transform_9, window_bounds = array<i64: 1, 32>}, {pipeline_mode = #tpu.pipeline_mode<synchronous>, transform_indices = @transform_10, window_bounds = array<i64: 32, 128>}, {pipeline_mode = #tpu.pipeline_mode<synchronous>, transform_indices = @transform_11, window_bounds = array<i64: 1, 128>}, {pipeline_mode = #tpu.pipeline_mode<synchronous>, transform_indices = @transform_12, window_bounds = array<i64: 128, 32>}, {pipeline_mode = #tpu.pipeline_mode<synchronous>, transform_indices = @transform_13, window_bounds = array<i64: 1, 32>}, {transform_indices = @transform_14, window_bounds = array<i64: 1, 64, 32>}]} {
    %c0_i32 = arith.constant 0 : i32
    %0 = arith.cmpi eq, %arg1, %c0_i32 : i32
    %1 = arith.extui %0 : i1 to i32
    %c0_i32_0 = arith.constant 0 : i32
    %2 = arith.cmpi ne, %1, %c0_i32_0 : i32
    scf.if %2 {
      %c0_58 = arith.constant 0 : index
      %c0_59 = arith.constant 0 : index
      %c0_60 = arith.constant 0 : index
      %93 = vector.load %arg2[%c0_58, %c0_59, %c0_60] : memref<1x64x32xf32, #tpu.memory_space<vmem>>, vector<1x64x32xf32>
      %94 = vector.shape_cast %93 : vector<1x64x32xf32> to vector<64x32xf32>
      %c0_61 = arith.constant 0 : index
      %c0_62 = arith.constant 0 : index
      %95 = vector.load %arg3[%c0_61, %c0_62] : memref<1x32xf32, #tpu.memory_space<vmem>>, vector<1x32xf32>
      %c0_63 = arith.constant 0 : index
      %c0_64 = arith.constant 0 : index
      %96 = vector.load %arg4[%c0_63, %c0_64] : memref<1x32xf32, #tpu.memory_space<vmem>>, vector<1x32xf32>
      %cst_65 = arith.constant dense<0.000000e+00> : vector<64xf32>
      %97 = vector.multi_reduction <add>, %94, %cst_65 [1] : vector<64x32xf32> to vector<64xf32>
      %98 = vector.shape_cast %97 : vector<64xf32> to vector<64x1xf32>
      %cst_66 = arith.constant 3.200000e+01 : f32
      %99 = vector.broadcast %cst_66 : f32 to vector<64x1xf32>
      %100 = arith.divf %98, %99 : vector<64x1xf32>
      %101 = vector.broadcast %100 : vector<64x1xf32> to vector<64x32xf32>
      %102 = arith.subf %94, %101 : vector<64x32xf32>
      %103 = arith.mulf %102, %102 : vector<64x32xf32>
      %cst_67 = arith.constant dense<0.000000e+00> : vector<64xf32>
      %104 = vector.multi_reduction <add>, %103, %cst_67 [1] : vector<64x32xf32> to vector<64xf32>
      %105 = vector.shape_cast %104 : vector<64xf32> to vector<64x1xf32>
      %cst_68 = arith.constant 3.200000e+01 : f32
      %106 = vector.broadcast %cst_68 : f32 to vector<64x1xf32>
      %107 = arith.divf %105, %106 : vector<64x1xf32>
      %108 = vector.broadcast %100 : vector<64x1xf32> to vector<64x32xf32>
      %109 = arith.subf %94, %108 : vector<64x32xf32>
      %cst_69 = arith.constant 9.99999974E-6 : f32
      %110 = vector.broadcast %cst_69 : f32 to vector<64x1xf32>
      %111 = arith.addf %107, %110 : vector<64x1xf32>
      %112 = math.rsqrt %111 : vector<64x1xf32>
      %113 = vector.broadcast %112 : vector<64x1xf32> to vector<64x32xf32>
      %114 = arith.mulf %109, %113 : vector<64x32xf32>
      %115 = vector.broadcast %95 : vector<1x32xf32> to vector<64x32xf32>
      %116 = arith.mulf %114, %115 : vector<64x32xf32>
      %117 = vector.broadcast %96 : vector<1x32xf32> to vector<64x32xf32>
      %118 = arith.addf %116, %117 : vector<64x32xf32>
      %119 = arith.truncf %118 : vector<64x32xf32> to vector<64x32xbf16>
      %c0_70 = arith.constant 0 : index
      %c0_71 = arith.constant 0 : index
      %120 = vector.load %arg17[%c0_70, %c0_71] : memref<64x32xbf16, #tpu.memory_space<vmem>>, vector<64x32xbf16>
      tpu.vector_store %arg17[%c0_70, %c0_71], %119 {strides = array<i32>} : memref<64x32xbf16, #tpu.memory_space<vmem>>, vector<64x32xbf16>,
      %c0_72 = arith.constant 0 : index
      %c0_73 = arith.constant 0 : index
      %121 = vector.load %arg6[%c0_72, %c0_73] : memref<32x64xbf16, #tpu.memory_space<vmem>>, vector<32x64xbf16>
      %cst_74 = arith.constant dense<0.000000e+00> : vector<64x64xf32>
      %122 = tpu.matmul %119, %121, %cst_74 {dimension_numbers = #tpu.dot_dimension_numbers<[1], [0], [0], [1], [0, 0, 1, 1], [], []>} : vector<64x32xbf16>, vector<32x64xbf16>, vector<64x64xf32> -> vector<64x64xf32>
      %123 = arith.truncf %122 : vector<64x64xf32> to vector<64x64xbf16>
      %124 = vector.extract_strided_slice %123 {offsets = [0, 0], sizes = [64, 8], strides = [1, 1]} : vector<64x64xbf16> to vector<64x8xbf16>
      %c0_75 = arith.constant 0 : index
      %c0_76 = arith.constant 0 : index
      %c0_77 = arith.constant 0 : index
      %125 = vector.load %arg18[%c0_75, %c0_76, %c0_77] : memref<4x64x8xbf16, #tpu.memory_space<vmem>>, vector<1x64x8xbf16>
      %126 = vector.shape_cast %125 : vector<1x64x8xbf16> to vector<64x8xbf16>
      %127 = vector.shape_cast %124 : vector<64x8xbf16> to vector<1x64x8xbf16>
      tpu.vector_store %arg18[%c0_75, %c0_76, %c0_77], %127 {strides = array<i32>} : memref<4x64x8xbf16, #tpu.memory_space<vmem>>, vector<1x64x8xbf16>,
      %128 = vector.extract_strided_slice %123 {offsets = [0, 32], sizes = [64, 8], strides = [1, 1]} : vector<64x64xbf16> to vector<64x8xbf16>
      %c0_78 = arith.constant 0 : index
      %c0_79 = arith.constant 0 : index
      %c0_80 = arith.constant 0 : index
      %129 = vector.load %arg19[%c0_78, %c0_79, %c0_80] : memref<4x64x8xbf16, #tpu.memory_space<vmem>>, vector<1x64x8xbf16>
      %130 = vector.shape_cast %129 : vector<1x64x8xbf16> to vector<64x8xbf16>
      %131 = vector.shape_cast %128 : vector<64x8xbf16> to vector<1x64x8xbf16>
      tpu.vector_store %arg19[%c0_78, %c0_79, %c0_80], %131 {strides = array<i32>} : memref<4x64x8xbf16, #tpu.memory_space<vmem>>, vector<1x64x8xbf16>,
      %132 = vector.extract_strided_slice %123 {offsets = [0, 8], sizes = [64, 8], strides = [1, 1]} : vector<64x64xbf16> to vector<64x8xbf16>
      %c1_81 = arith.constant 1 : index
      %c0_82 = arith.constant 0 : index
      %c0_83 = arith.constant 0 : index
      %133 = vector.load %arg18[%c1_81, %c0_82, %c0_83] : memref<4x64x8xbf16, #tpu.memory_space<vmem>>, vector<1x64x8xbf16>
      %134 = vector.shape_cast %133 : vector<1x64x8xbf16> to vector<64x8xbf16>
      %135 = vector.shape_cast %132 : vector<64x8xbf16> to vector<1x64x8xbf16>
      tpu.vector_store %arg18[%c1_81, %c0_82, %c0_83], %135 {strides = array<i32>} : memref<4x64x8xbf16, #tpu.memory_space<vmem>>, vector<1x64x8xbf16>,
      %136 = vector.extract_strided_slice %123 {offsets = [0, 40], sizes = [64, 8], strides = [1, 1]} : vector<64x64xbf16> to vector<64x8xbf16>
      %c1_84 = arith.constant 1 : index
      %c0_85 = arith.constant 0 : index
      %c0_86 = arith.constant 0 : index
      %137 = vector.load %arg19[%c1_84, %c0_85, %c0_86] : memref<4x64x8xbf16, #tpu.memory_space<vmem>>, vector<1x64x8xbf16>
      %138 = vector.shape_cast %137 : vector<1x64x8xbf16> to vector<64x8xbf16>
      %139 = vector.shape_cast %136 : vector<64x8xbf16> to vector<1x64x8xbf16>
      tpu.vector_store %arg19[%c1_84, %c0_85, %c0_86], %139 {strides = array<i32>} : memref<4x64x8xbf16, #tpu.memory_space<vmem>>, vector<1x64x8xbf16>,
      %140 = vector.extract_strided_slice %123 {offsets = [0, 16], sizes = [64, 8], strides = [1, 1]} : vector<64x64xbf16> to vector<64x8xbf16>
      %c2_87 = arith.constant 2 : index
      %c0_88 = arith.constant 0 : index
      %c0_89 = arith.constant 0 : index
      %141 = vector.load %arg18[%c2_87, %c0_88, %c0_89] : memref<4x64x8xbf16, #tpu.memory_space<vmem>>, vector<1x64x8xbf16>
      %142 = vector.shape_cast %141 : vector<1x64x8xbf16> to vector<64x8xbf16>
      %143 = vector.shape_cast %140 : vector<64x8xbf16> to vector<1x64x8xbf16>
      tpu.vector_store %arg18[%c2_87, %c0_88, %c0_89], %143 {strides = array<i32>} : memref<4x64x8xbf16, #tpu.memory_space<vmem>>, vector<1x64x8xbf16>,
      %144 = vector.extract_strided_slice %123 {offsets = [0, 48], sizes = [64, 8], strides = [1, 1]} : vector<64x64xbf16> to vector<64x8xbf16>
      %c2_90 = arith.constant 2 : index
      %c0_91 = arith.constant 0 : index
      %c0_92 = arith.constant 0 : index
      %145 = vector.load %arg19[%c2_90, %c0_91, %c0_92] : memref<4x64x8xbf16, #tpu.memory_space<vmem>>, vector<1x64x8xbf16>
      %146 = vector.shape_cast %145 : vector<1x64x8xbf16> to vector<64x8xbf16>
      %147 = vector.shape_cast %144 : vector<64x8xbf16> to vector<1x64x8xbf16>
      tpu.vector_store %arg19[%c2_90, %c0_91, %c0_92], %147 {strides = array<i32>} : memref<4x64x8xbf16, #tpu.memory_space<vmem>>, vector<1x64x8xbf16>,
      %148 = vector.extract_strided_slice %123 {offsets = [0, 24], sizes = [64, 8], strides = [1, 1]} : vector<64x64xbf16> to vector<64x8xbf16>
      %c3_93 = arith.constant 3 : index
      %c0_94 = arith.constant 0 : index
      %c0_95 = arith.constant 0 : index
      %149 = vector.load %arg18[%c3_93, %c0_94, %c0_95] : memref<4x64x8xbf16, #tpu.memory_space<vmem>>, vector<1x64x8xbf16>
      %150 = vector.shape_cast %149 : vector<1x64x8xbf16> to vector<64x8xbf16>
      %151 = vector.shape_cast %148 : vector<64x8xbf16> to vector<1x64x8xbf16>
      tpu.vector_store %arg18[%c3_93, %c0_94, %c0_95], %151 {strides = array<i32>} : memref<4x64x8xbf16, #tpu.memory_space<vmem>>, vector<1x64x8xbf16>,
      %152 = vector.extract_strided_slice %123 {offsets = [0, 56], sizes = [64, 8], strides = [1, 1]} : vector<64x64xbf16> to vector<64x8xbf16>
      %c3_96 = arith.constant 3 : index
      %c0_97 = arith.constant 0 : index
      %c0_98 = arith.constant 0 : index
      %153 = vector.load %arg19[%c3_96, %c0_97, %c0_98] : memref<4x64x8xbf16, #tpu.memory_space<vmem>>, vector<1x64x8xbf16>
      %154 = vector.shape_cast %153 : vector<1x64x8xbf16> to vector<64x8xbf16>
      %155 = vector.shape_cast %152 : vector<64x8xbf16> to vector<1x64x8xbf16>
      tpu.vector_store %arg19[%c3_96, %c0_97, %c0_98], %155 {strides = array<i32>} : memref<4x64x8xbf16, #tpu.memory_space<vmem>>, vector<1x64x8xbf16>,
    } else {
    }
    %c64_i32 = arith.constant 64 : i32
    %3 = arith.muli %arg1, %c64_i32 : i32
    %4 = tpu.assume_multiple %3, 64 : i32
    %5 = arith.index_cast %4 : i32 to index
    %c0 = arith.constant 0 : index
    %6 = vector.load %arg17[%5, %c0] : memref<64x32xbf16, #tpu.memory_space<vmem>>, vector<64x32xbf16>
    %c0_1 = arith.constant 0 : index
    %c0_2 = arith.constant 0 : index
    %7 = vector.load %arg5[%c0_1, %c0_2] : memref<32x32xbf16, #tpu.memory_space<vmem>>, vector<32x32xbf16>
    %cst = arith.constant dense<0.000000e+00> : vector<64x32xf32>
    %8 = tpu.matmul %6, %7, %cst {dimension_numbers = #tpu.dot_dimension_numbers<[1], [0], [0], [1], [0, 0, 1, 1], [], []>} : vector<64x32xbf16>, vector<32x32xbf16>, vector<64x32xf32> -> vector<64x32xf32>
    %9 = arith.truncf %8 : vector<64x32xf32> to vector<64x32xbf16>
    %10 = vector.extract_strided_slice %9 {offsets = [0, 0], sizes = [64, 8], strides = [1, 1]} : vector<64x32xbf16> to vector<64x8xbf16>
    %c0_3 = arith.constant 0 : index
    %c0_4 = arith.constant 0 : index
    %c0_5 = arith.constant 0 : index
    %11 = vector.load %arg20[%c0_3, %c0_4, %c0_5] : memref<4x64x8xbf16, #tpu.memory_space<vmem>>, vector<1x64x8xbf16>
    %12 = vector.shape_cast %11 : vector<1x64x8xbf16> to vector<64x8xbf16>
    %13 = vector.shape_cast %10 : vector<64x8xbf16> to vector<1x64x8xbf16>
    tpu.vector_store %arg20[%c0_3, %c0_4, %c0_5], %13 {strides = array<i32>} : memref<4x64x8xbf16, #tpu.memory_space<vmem>>, vector<1x64x8xbf16>,
    %14 = vector.extract_strided_slice %9 {offsets = [0, 8], sizes = [64, 8], strides = [1, 1]} : vector<64x32xbf16> to vector<64x8xbf16>
    %c1 = arith.constant 1 : index
    %c0_6 = arith.constant 0 : index
    %c0_7 = arith.constant 0 : index
    %15 = vector.load %arg20[%c1, %c0_6, %c0_7] : memref<4x64x8xbf16, #tpu.memory_space<vmem>>, vector<1x64x8xbf16>
    %16 = vector.shape_cast %15 : vector<1x64x8xbf16> to vector<64x8xbf16>
    %17 = vector.shape_cast %14 : vector<64x8xbf16> to vector<1x64x8xbf16>
    tpu.vector_store %arg20[%c1, %c0_6, %c0_7], %17 {strides = array<i32>} : memref<4x64x8xbf16, #tpu.memory_space<vmem>>, vector<1x64x8xbf16>,
    %18 = vector.extract_strided_slice %9 {offsets = [0, 16], sizes = [64, 8], strides = [1, 1]} : vector<64x32xbf16> to vector<64x8xbf16>
    %c2 = arith.constant 2 : index
    %c0_8 = arith.constant 0 : index
    %c0_9 = arith.constant 0 : index
    %19 = vector.load %arg20[%c2, %c0_8, %c0_9] : memref<4x64x8xbf16, #tpu.memory_space<vmem>>, vector<1x64x8xbf16>
    %20 = vector.shape_cast %19 : vector<1x64x8xbf16> to vector<64x8xbf16>
    %21 = vector.shape_cast %18 : vector<64x8xbf16> to vector<1x64x8xbf16>
    tpu.vector_store %arg20[%c2, %c0_8, %c0_9], %21 {strides = array<i32>} : memref<4x64x8xbf16, #tpu.memory_space<vmem>>, vector<1x64x8xbf16>,
    %22 = vector.extract_strided_slice %9 {offsets = [0, 24], sizes = [64, 8], strides = [1, 1]} : vector<64x32xbf16> to vector<64x8xbf16>
    %c3 = arith.constant 3 : index
    %c0_10 = arith.constant 0 : index
    %c0_11 = arith.constant 0 : index
    %23 = vector.load %arg20[%c3, %c0_10, %c0_11] : memref<4x64x8xbf16, #tpu.memory_space<vmem>>, vector<1x64x8xbf16>
    %24 = vector.shape_cast %23 : vector<1x64x8xbf16> to vector<64x8xbf16>
    %25 = vector.shape_cast %22 : vector<64x8xbf16> to vector<1x64x8xbf16>
    tpu.vector_store %arg20[%c3, %c0_10, %c0_11], %25 {strides = array<i32>} : memref<4x64x8xbf16, #tpu.memory_space<vmem>>, vector<1x64x8xbf16>,
    %c0_i32_12 = arith.constant 0 : i32
    %c4_i32 = arith.constant 4 : i32
    %26 = arith.addi %c0_i32_12, %c4_i32 : i32
    %c1_i32 = arith.constant 1 : i32
    scf.for %arg22 = %c0_i32_12 to %26 step %c1_i32  : i32 {
      %93 = arith.index_cast %arg22 : i32 to index
      %c0_58 = arith.constant 0 : index
      %c0_59 = arith.constant 0 : index
      %94 = vector.load %arg20[%93, %c0_58, %c0_59] : memref<4x64x8xbf16, #tpu.memory_space<vmem>>, vector<1x64x8xbf16>
      %95 = vector.shape_cast %94 : vector<1x64x8xbf16> to vector<64x8xbf16>
      %96 = arith.index_cast %arg22 : i32 to index
      %c0_60 = arith.constant 0 : index
      %c0_61 = arith.constant 0 : index
      %97 = vector.load %arg18[%96, %c0_60, %c0_61] : memref<4x64x8xbf16, #tpu.memory_space<vmem>>, vector<1x64x8xbf16>
      %98 = vector.shape_cast %97 : vector<1x64x8xbf16> to vector<64x8xbf16>
      %cst_62 = arith.constant dense<0.000000e+00> : vector<64x64xf32>
      %99 = tpu.matmul %95, %98, %cst_62 {dimension_numbers = #tpu.dot_dimension_numbers<[1], [1], [0], [0], [0, 0, 1, 0], [], []>} : vector<64x8xbf16>, vector<64x8xbf16>, vector<64x64xf32> -> vector<64x64xf32>
      %100 = arith.index_cast %arg22 : i32 to index
      %c0_63 = arith.constant 0 : index
      %c0_64 = arith.constant 0 : index
      %101 = vector.load %arg9[%100, %c0_63, %c0_64] : memref<4x64x64xbf16, #tpu.memory_space<vmem>>, vector<1x64x64xbf16>
      %102 = vector.shape_cast %101 : vector<1x64x64xbf16> to vector<64x64xbf16>
      %103 = arith.extf %102 : vector<64x64xbf16> to vector<64x64xf32>
      %104 = arith.addf %99, %103 : vector<64x64xf32>
      %cst_65 = arith.constant dense<0xFF800000> : vector<64xf32>
      %105 = vector.multi_reduction <maximumf>, %104, %cst_65 [1] : vector<64x64xf32> to vector<64xf32>
      %106 = vector.shape_cast %105 : vector<64xf32> to vector<64x1xf32>
      %107 = vector.broadcast %106 : vector<64x1xf32> to vector<64x64xf32>
      %108 = arith.subf %104, %107 : vector<64x64xf32>
      %109 = math.exp %108 : vector<64x64xf32>
      %cst_66 = arith.constant dense<0.000000e+00> : vector<64xf32>
      %110 = vector.multi_reduction <add>, %109, %cst_66 [1] : vector<64x64xf32> to vector<64xf32>
      %111 = vector.shape_cast %110 : vector<64xf32> to vector<64x1xf32>
      %112 = tpu.reciprocal %111 {approx = true} : vector<64x1xf32> -> vector<64x1xf32>
      %113 = vector.broadcast %112 : vector<64x1xf32> to vector<64x64xf32>
      %114 = arith.mulf %109, %113 : vector<64x64xf32>
      %115 = arith.truncf %114 : vector<64x64xf32> to vector<64x64xbf16>
      %116 = arith.index_cast %arg22 : i32 to index
      %c0_67 = arith.constant 0 : index
      %c0_68 = arith.constant 0 : index
      %117 = vector.load %arg19[%116, %c0_67, %c0_68] : memref<4x64x8xbf16, #tpu.memory_space<vmem>>, vector<1x64x8xbf16>
      %118 = vector.shape_cast %117 : vector<1x64x8xbf16> to vector<64x8xbf16>
      %cst_69 = arith.constant dense<0.000000e+00> : vector<64x8xf32>
      %119 = tpu.matmul %115, %118, %cst_69 {dimension_numbers = #tpu.dot_dimension_numbers<[1], [0], [0], [1], [0, 0, 1, 1], [], []>} : vector<64x64xbf16>, vector<64x8xbf16>, vector<64x8xf32> -> vector<64x8xf32>
      %120 = arith.truncf %119 : vector<64x8xf32> to vector<64x8xbf16>
      %121 = arith.index_cast %arg22 : i32 to index
      %c0_70 = arith.constant 0 : index
      %c0_71 = arith.constant 0 : index
      %122 = vector.load %arg21[%121, %c0_70, %c0_71] : memref<4x64x8xbf16, #tpu.memory_space<vmem>>, vector<1x64x8xbf16>
      %123 = vector.shape_cast %122 : vector<1x64x8xbf16> to vector<64x8xbf16>
      %124 = vector.shape_cast %120 : vector<64x8xbf16> to vector<1x64x8xbf16>
      tpu.vector_store %arg21[%121, %c0_70, %c0_71], %124 {strides = array<i32>} : memref<4x64x8xbf16, #tpu.memory_space<vmem>>, vector<1x64x8xbf16>,
    }
    %c4_i32_13 = arith.constant 4 : i32
    %c0_14 = arith.constant 0 : index
    %c0_15 = arith.constant 0 : index
    %c0_16 = arith.constant 0 : index
    %27 = vector.load %arg21[%c0_14, %c0_15, %c0_16] : memref<4x64x8xbf16, #tpu.memory_space<vmem>>, vector<1x64x8xbf16>
    %28 = vector.shape_cast %27 : vector<1x64x8xbf16> to vector<64x8xbf16>
    %c1_17 = arith.constant 1 : index
    %c0_18 = arith.constant 0 : index
    %c0_19 = arith.constant 0 : index
    %29 = vector.load %arg21[%c1_17, %c0_18, %c0_19] : memref<4x64x8xbf16, #tpu.memory_space<vmem>>, vector<1x64x8xbf16>
    %30 = vector.shape_cast %29 : vector<1x64x8xbf16> to vector<64x8xbf16>
    %c2_20 = arith.constant 2 : index
    %c0_21 = arith.constant 0 : index
    %c0_22 = arith.constant 0 : index
    %31 = vector.load %arg21[%c2_20, %c0_21, %c0_22] : memref<4x64x8xbf16, #tpu.memory_space<vmem>>, vector<1x64x8xbf16>
    %32 = vector.shape_cast %31 : vector<1x64x8xbf16> to vector<64x8xbf16>
    %c3_23 = arith.constant 3 : index
    %c0_24 = arith.constant 0 : index
    %c0_25 = arith.constant 0 : index
    %33 = vector.load %arg21[%c3_23, %c0_24, %c0_25] : memref<4x64x8xbf16, #tpu.memory_space<vmem>>, vector<1x64x8xbf16>
    %34 = vector.shape_cast %33 : vector<1x64x8xbf16> to vector<64x8xbf16>
    %35 = tpu.concatenate %28, %30, %32, %34 in 1 : vector<64x8xbf16>, vector<64x8xbf16>, vector<64x8xbf16>, vector<64x8xbf16> -> vector<64x32xbf16>
    %c0_26 = arith.constant 0 : index
    %c0_27 = arith.constant 0 : index
    %36 = vector.load %arg7[%c0_26, %c0_27] : memref<32x32xbf16, #tpu.memory_space<vmem>>, vector<32x32xbf16>
    %cst_28 = arith.constant dense<0.000000e+00> : vector<64x32xf32>
    %37 = tpu.matmul %35, %36, %cst_28 {dimension_numbers = #tpu.dot_dimension_numbers<[1], [0], [0], [1], [0, 0, 1, 1], [], []>} : vector<64x32xbf16>, vector<32x32xbf16>, vector<64x32xf32> -> vector<64x32xf32>
    %c0_29 = arith.constant 0 : index
    %38 = arith.index_cast %4 : i32 to index
    %c0_30 = arith.constant 0 : index
    %39 = vector.load %arg2[%c0_29, %38, %c0_30] : memref<1x64x32xf32, #tpu.memory_space<vmem>>, vector<1x64x32xf32>
    %40 = vector.shape_cast %39 : vector<1x64x32xf32> to vector<64x32xf32>
    %41 = arith.addf %40, %37 : vector<64x32xf32>
    %c0_31 = arith.constant 0 : index
    %c0_32 = arith.constant 0 : index
    %42 = vector.load %arg8[%c0_31, %c0_32] : memref<1x32xf32, #tpu.memory_space<vmem>>, vector<1x32xf32>
    %43 = vector.broadcast %42 : vector<1x32xf32> to vector<64x32xf32>
    %44 = arith.addf %41, %43 : vector<64x32xf32>
    %c0_33 = arith.constant 0 : index
    %c0_34 = arith.constant 0 : index
    %45 = vector.load %arg10[%c0_33, %c0_34] : memref<1x32xf32, #tpu.memory_space<vmem>>, vector<1x32xf32>
    %c0_35 = arith.constant 0 : index
    %c0_36 = arith.constant 0 : index
    %46 = vector.load %arg11[%c0_35, %c0_36] : memref<1x32xf32, #tpu.memory_space<vmem>>, vector<1x32xf32>
    %cst_37 = arith.constant dense<0.000000e+00> : vector<64xf32>
    %47 = vector.multi_reduction <add>, %44, %cst_37 [1] : vector<64x32xf32> to vector<64xf32>
    %48 = vector.shape_cast %47 : vector<64xf32> to vector<64x1xf32>
    %cst_38 = arith.constant 3.200000e+01 : f32
    %49 = vector.broadcast %cst_38 : f32 to vector<64x1xf32>
    %50 = arith.divf %48, %49 : vector<64x1xf32>
    %51 = vector.broadcast %50 : vector<64x1xf32> to vector<64x32xf32>
    %52 = arith.subf %44, %51 : vector<64x32xf32>
    %53 = arith.mulf %52, %52 : vector<64x32xf32>
    %cst_39 = arith.constant dense<0.000000e+00> : vector<64xf32>
    %54 = vector.multi_reduction <add>, %53, %cst_39 [1] : vector<64x32xf32> to vector<64xf32>
    %55 = vector.shape_cast %54 : vector<64xf32> to vector<64x1xf32>
    %cst_40 = arith.constant 3.200000e+01 : f32
    %56 = vector.broadcast %cst_40 : f32 to vector<64x1xf32>
    %57 = arith.divf %55, %56 : vector<64x1xf32>
    %58 = vector.broadcast %50 : vector<64x1xf32> to vector<64x32xf32>
    %59 = arith.subf %44, %58 : vector<64x32xf32>
    %cst_41 = arith.constant 9.99999974E-6 : f32
    %60 = vector.broadcast %cst_41 : f32 to vector<64x1xf32>
    %61 = arith.addf %57, %60 : vector<64x1xf32>
    %62 = math.rsqrt %61 : vector<64x1xf32>
    %63 = vector.broadcast %62 : vector<64x1xf32> to vector<64x32xf32>
    %64 = arith.mulf %59, %63 : vector<64x32xf32>
    %65 = vector.broadcast %45 : vector<1x32xf32> to vector<64x32xf32>
    %66 = arith.mulf %64, %65 : vector<64x32xf32>
    %67 = vector.broadcast %46 : vector<1x32xf32> to vector<64x32xf32>
    %68 = arith.addf %66, %67 : vector<64x32xf32>
    %69 = arith.truncf %68 : vector<64x32xf32> to vector<64x32xbf16>
    %c0_42 = arith.constant 0 : index
    %c0_43 = arith.constant 0 : index
    %70 = vector.load %arg12[%c0_42, %c0_43] : memref<32x128xbf16, #tpu.memory_space<vmem>>, vector<32x128xbf16>
    %cst_44 = arith.constant dense<0.000000e+00> : vector<64x128xf32>
    %71 = tpu.matmul %69, %70, %cst_44 {dimension_numbers = #tpu.dot_dimension_numbers<[1], [0], [0], [1], [0, 0, 1, 1], [], []>} : vector<64x32xbf16>, vector<32x128xbf16>, vector<64x128xf32> -> vector<64x128xf32>
    %c0_45 = arith.constant 0 : index
    %c0_46 = arith.constant 0 : index
    %72 = vector.load %arg13[%c0_45, %c0_46] : memref<1x128xf32, #tpu.memory_space<vmem>>, vector<1x128xf32>
    %73 = vector.broadcast %72 : vector<1x128xf32> to vector<64x128xf32>
    %74 = arith.addf %71, %73 : vector<64x128xf32>
    %cst_47 = arith.constant 5.000000e-01 : f32
    %75 = vector.broadcast %cst_47 : f32 to vector<64x128xf32>
    %76 = arith.mulf %75, %74 : vector<64x128xf32>
    %cst_48 = arith.constant 0.707106769 : f32
    %77 = vector.broadcast %cst_48 : f32 to vector<64x128xf32>
    %78 = arith.mulf %74, %77 : vector<64x128xf32>
    %79 = math.erf %78 : vector<64x128xf32>
    %cst_49 = arith.constant 1.000000e+00 : f32
    %80 = vector.broadcast %cst_49 : f32 to vector<64x128xf32>
    %81 = arith.addf %80, %79 : vector<64x128xf32>
    %82 = arith.mulf %76, %81 : vector<64x128xf32>
    %83 = arith.truncf %82 : vector<64x128xf32> to vector<64x128xbf16>
    %c0_50 = arith.constant 0 : index
    %c0_51 = arith.constant 0 : index
    %84 = vector.load %arg14[%c0_50, %c0_51] : memref<128x32xbf16, #tpu.memory_space<vmem>>, vector<128x32xbf16>
    %cst_52 = arith.constant dense<0.000000e+00> : vector<64x32xf32>
    %85 = tpu.matmul %83, %84, %cst_52 {dimension_numbers = #tpu.dot_dimension_numbers<[1], [0], [0], [1], [0, 0, 1, 1], [], []>} : vector<64x128xbf16>, vector<128x32xbf16>, vector<64x32xf32> -> vector<64x32xf32>
    %c0_53 = arith.constant 0 : index
    %c0_54 = arith.constant 0 : index
    %86 = vector.load %arg15[%c0_53, %c0_54] : memref<1x32xf32, #tpu.memory_space<vmem>>, vector<1x32xf32>
    %87 = vector.broadcast %86 : vector<1x32xf32> to vector<64x32xf32>
    %88 = arith.addf %85, %87 : vector<64x32xf32>
    %89 = arith.addf %44, %88 : vector<64x32xf32>
    %c0_55 = arith.constant 0 : index
    %c0_56 = arith.constant 0 : index
    %c0_57 = arith.constant 0 : index
    %90 = vector.load %arg16[%c0_55, %c0_56, %c0_57] : memref<1x64x32xf32, #tpu.memory_space<vmem>>, vector<1x64x32xf32>
    %91 = vector.shape_cast %90 : vector<1x64x32xf32> to vector<64x32xf32>
    %92 = vector.shape_cast %89 : vector<64x32xf32> to vector<1x64x32xf32>
    tpu.vector_store %arg16[%c0_55, %c0_56, %c0_57], %92 {strides = array<i32>} : memref<1x64x32xf32, #tpu.memory_space<vmem>>, vector<1x64x32xf32>,
    return
  }
  func.func @transform_0(%arg0: i32, %arg1: i32) -> (i32, i32, i32) {
    %c0_i32 = arith.constant 0 : i32
    %c0_i32_0 = arith.constant 0 : i32
    %c0_i32_1 = arith.constant 0 : i32
    return %arg0, %c0_i32, %c0_i32_0 : i32, i32, i32
  }
  func.func @transform_1(%arg0: i32, %arg1: i32) -> (i32, i32) {
    %c0_i32 = arith.constant 0 : i32
    %c0_i32_0 = arith.constant 0 : i32
    %c0_i32_1 = arith.constant 0 : i32
    return %c0_i32, %c0_i32_0 : i32, i32
  }
  func.func @transform_2(%arg0: i32, %arg1: i32) -> (i32, i32) {
    %c0_i32 = arith.constant 0 : i32
    %c0_i32_0 = arith.constant 0 : i32
    %c0_i32_1 = arith.constant 0 : i32
    return %c0_i32, %c0_i32_0 : i32, i32
  }
  func.func @transform_3(%arg0: i32, %arg1: i32) -> (i32, i32) {
    %c0_i32 = arith.constant 0 : i32
    %c0_i32_0 = arith.constant 0 : i32
    %c0_i32_1 = arith.constant 0 : i32
    return %c0_i32, %c0_i32_0 : i32, i32
  }
  func.func @transform_4(%arg0: i32, %arg1: i32) -> (i32, i32) {
    %c0_i32 = arith.constant 0 : i32
    %c0_i32_0 = arith.constant 0 : i32
    %c0_i32_1 = arith.constant 0 : i32
    return %c0_i32, %c0_i32_0 : i32, i32
  }
  func.func @transform_5(%arg0: i32, %arg1: i32) -> (i32, i32) {
    %c0_i32 = arith.constant 0 : i32
    %c0_i32_0 = arith.constant 0 : i32
    %c0_i32_1 = arith.constant 0 : i32
    return %c0_i32, %c0_i32_0 : i32, i32
  }
  func.func @transform_6(%arg0: i32, %arg1: i32) -> (i32, i32) {
    %c0_i32 = arith.constant 0 : i32
    %c0_i32_0 = arith.constant 0 : i32
    %c0_i32_1 = arith.constant 0 : i32
    return %c0_i32, %c0_i32_0 : i32, i32
  }
  func.func @transform_7(%arg0: i32, %arg1: i32) -> (i32, i32, i32) {
    %c0_i32 = arith.constant 0 : i32
    %c0_i32_0 = arith.constant 0 : i32
    %c0_i32_1 = arith.constant 0 : i32
    return %c0_i32, %arg1, %c0_i32_0 : i32, i32, i32
  }
  func.func @transform_8(%arg0: i32, %arg1: i32) -> (i32, i32) {
    %c0_i32 = arith.constant 0 : i32
    %c0_i32_0 = arith.constant 0 : i32
    %c0_i32_1 = arith.constant 0 : i32
    return %c0_i32, %c0_i32_0 : i32, i32
  }
  func.func @transform_9(%arg0: i32, %arg1: i32) -> (i32, i32) {
    %c0_i32 = arith.constant 0 : i32
    %c0_i32_0 = arith.constant 0 : i32
    %c0_i32_1 = arith.constant 0 : i32
    return %c0_i32, %c0_i32_0 : i32, i32
  }
  func.func @transform_10(%arg0: i32, %arg1: i32) -> (i32, i32) {
    %c0_i32 = arith.constant 0 : i32
    %c0_i32_0 = arith.constant 0 : i32
    %c0_i32_1 = arith.constant 0 : i32
    return %c0_i32, %c0_i32_0 : i32, i32
  }
  func.func @transform_11(%arg0: i32, %arg1: i32) -> (i32, i32) {
    %c0_i32 = arith.constant 0 : i32
    %c0_i32_0 = arith.constant 0 : i32
    %c0_i32_1 = arith.constant 0 : i32
    return %c0_i32, %c0_i32_0 : i32, i32
  }
  func.func @transform_12(%arg0: i32, %arg1: i32) -> (i32, i32) {
    %c0_i32 = arith.constant 0 : i32
    %c0_i32_0 = arith.constant 0 : i32
    %c0_i32_1 = arith.constant 0 : i32
    return %c0_i32, %c0_i32_0 : i32, i32
  }
  func.func @transform_13(%arg0: i32, %arg1: i32) -> (i32, i32) {
    %c0_i32 = arith.constant 0 : i32
    %c0_i32_0 = arith.constant 0 : i32
    %c0_i32_1 = arith.constant 0 : i32
    return %c0_i32, %c0_i32_0 : i32, i32
  }
  func.func @transform_14(%arg0: i32, %arg1: i32) -> (i32, i32, i32) {
    %c0_i32 = arith.constant 0 : i32
    %c0_i32_0 = arith.constant 0 : i32
    return %arg0, %arg1, %c0_i32 : i32, i32, i32
  }
}

</mosaic_0001>

<llo_original>
// kernel: transformer_forward.1
$region0: #{transformer_forward.1}
  #allocation0 [shape = 'u32[]', space=smem, size = 0x4, offset = 0x4, fixed_abs, tag = 'smem constant byte address 0x4 - core index']
  #allocation1 [shape = 'u32[144,128]{1,0:T(1,128)}', space=vmem, size = 0x12000, scoped, tag = 'internal scratch']
  #allocation2 [shape = 'bf16[64,32]{1,0:T(8,128)(2,1)}', space=vmem, size = 0x4000, scoped, tag = 'scratch operand']
  #allocation3 [shape = 'bf16[4,64,8]{2,1,0:T(8,128)(2,1)}', space=vmem, size = 0x10000, scoped, tag = 'scratch operand']
  #allocation4 [shape = 'bf16[4,64,8]{2,1,0:T(8,128)(2,1)}', space=vmem, size = 0x10000, scoped, tag = 'scratch operand']
  #allocation5 [shape = 'bf16[4,64,8]{2,1,0:T(8,128)(2,1)}', space=vmem, size = 0x10000, scoped, tag = 'scratch operand']
  #allocation6 [shape = 'bf16[4,64,8]{2,1,0:T(8,128)(2,1)}', space=vmem, size = 0x10000, scoped, tag = 'scratch operand']
  %s0 = inlined_call_operand.vmem [shape: f32[2,64,32], index: 0, kind: input, shape index: {}]
  %s1 = inlined_call_operand.vmem [shape: f32[1,32], index: 1, kind: input, shape index: {}]
  %s2 = inlined_call_operand.vmem [shape: f32[1,32], index: 2, kind: input, shape index: {}]
  %s3 = inlined_call_operand.vmem [shape: bf16[32,32], index: 3, kind: input, shape index: {}]
  %s4 = inlined_call_operand.vmem [shape: bf16[32,64], index: 4, kind: input, shape index: {}]
  %s5 = inlined_call_operand.vmem [shape: bf16[32,32], index: 5, kind: input, shape index: {}]
  %s6 = inlined_call_operand.vmem [shape: f32[1,32], index: 6, kind: input, shape index: {}]
  %s7 = inlined_call_operand.vmem [shape: bf16[4,64,64], index: 7, kind: input, shape index: {}]
  %s8 = inlined_call_operand.vmem [shape: f32[1,32], index: 8, kind: input, shape index: {}]
  %s9 = inlined_call_operand.vmem [shape: f32[1,32], index: 9, kind: input, shape index: {}]
  %s10 = inlined_call_operand.vmem [shape: bf16[32,128], index: 10, kind: input, shape index: {}]
  %s11 = inlined_call_operand.vmem [shape: f32[1,128], index: 11, kind: input, shape index: {}]
  %s12 = inlined_call_operand.vmem [shape: bf16[128,32], index: 12, kind: input, shape index: {}]
  %s13 = inlined_call_operand.vmem [shape: f32[1,32], index: 13, kind: input, shape index: {}]
  %s14 = inlined_call_operand.hbm [shape: f32[2,64,32], index: 14, kind: output, shape index: {}]
  %s15 = sld [smem:[#allocation0]]
  $region100: #{transformer_forward.1} parent=0
    _
  %s17 = ssub.s32 1, %s15
  %s18 = scalar_select 0, %s17, %s15
  $region1: #{transformer_forward.1} parent=0
    #allocation7 [shape = 'u8[65536]{0}', space=vmem, size = 0x10000, scoped, tag = 'output window, operand 0']
    #allocation8 [shape = 's32[2]{0}', space=sflag, size = 0x8, scoped, tag = 'scoped memory for transformer_forward.1']
    %19 = vsyncpa [#allocation8], 0
    %s20 = scalar_lea.sflag [#allocation8], 1
    %21 = vsyncpa %s20, 0
    loop: start=0, step=1, limit=4
    $region2: #{transformer_forward.1} parent=1 // loop_pre_header
      _
    $region3: #{transformer_forward.1} parent=1 // loop_header
      %s23 = sphi 0, %s27
      %p24 = scmp.ge.s32.totalorder %s23, 4
      %s30 = sphi 0, %s42
      %s31 = sphi 0, %s38
      %s32 = sphi 0, %s30
      %s33 = sphi 0, %s31
      %s34 = sphi 0, %s32
      %s35 = sphi 0, %s33
      %s45 = sphi 0, %s47
      %s48 = sphi 0, %s45
      %s49 = sphi 0, %s48
      %s65 = sphi 0, %s49
      %s69 = sphi 0, %s69
      %s71 = sphi 0, %s69
      %s72 = sphi 0, %s71
      %s86 = sphi 0, %s72
      %s90 = sphi 0, %s90
      %s92 = sphi 0, %s90
      %s93 = sphi 0, %s92
      %s107 = sphi 0, %s93
      %s111 = sphi 0, %s111
      %s113 = sphi 0, %s111
      %s114 = sphi 0, %s113
      %s128 = sphi 0, %s114
      %s132 = sphi 0, %s132
      %s134 = sphi 0, %s132
      %s135 = sphi 0, %s134
      %s149 = sphi 0, %s135
      %s153 = sphi 0, %s153
      %s155 = sphi 0, %s153
      %s156 = sphi 0, %s155
      %s170 = sphi 0, %s156
      %s174 = sphi 0, %s174
      %s176 = sphi 0, %s174
      %s177 = sphi 0, %s176
      %s191 = sphi 0, %s177
      %s197 = sphi 0, %s199
      %s200 = sphi 0, %s197
      %s201 = sphi 0, %s200
      %s217 = sphi 0, %s201
      %s221 = sphi 0, %s221
      %s223 = sphi 0, %s221
      %s224 = sphi 0, %s223
      %s238 = sphi 0, %s224
      %s242 = sphi 0, %s242
      %s244 = sphi 0, %s242
      %s245 = sphi 0, %s244
      %s259 = sphi 0, %s245
      %s263 = sphi 0, %s263
      %s265 = sphi 0, %s263
      %s266 = sphi 0, %s265
      %s280 = sphi 0, %s266
      %s284 = sphi 0, %s284
      %s286 = sphi 0, %s284
      %s287 = sphi 0, %s286
      %s301 = sphi 0, %s287
      %s305 = sphi 0, %s305
      %s307 = sphi 0, %s305
      %s308 = sphi 0, %s307
      %s322 = sphi 0, %s308
      %s326 = sphi 0, %s326
      %s328 = sphi 0, %s326
      %s329 = sphi 0, %s328
      %s343 = sphi 0, %s329
      %s351 = sphi 0, %s353
      %s354 = sphi 0, %s351
      %s355 = sphi 0, %s354
      %s371 = sphi 0, %s355
    $region4: #{transformer_forward.1} parent=1 // loop_header_branch
      %26 = sbr.rel (%p24) target = $region8
    $region5: #{transformer_forward.1} parent=1 // loop_body
      %s28 = ssub.s32 %s23, 1
      %s29 = ssub.s32 %s23, 2
      %s36 = sadd.s32 1, %s31
      %p37 = scmp.ge.s32.totalorder %s36, 1
      %s38 = scalar_select %p37, 0, %s36
      %s39 = sadd.s32 1, %s30
      %s40 = scalar_select %p37, %s39, %s30
      %p41 = scmp.ge.s32.totalorder %s40, 2
      %s42 = scalar_select %p41, 0, %s40
      %s43 = ssub.s32 %s30, %s42
      %p44 = scmp.eq.s32.totalorder %s43, 0
      %s46 = sadd.s32 %s45, 1
      %s47 = scalar_select %p44, %s45, %s46
      %p50 = pneg %p44
      %p51 = scmp.eq.s32.totalorder %s23, 1
      %p52 = por %p50, %p51
      %p53 = scmp.ne.s32.totalorder %s45, %s48
      %p54 = scmp.eq.s32.totalorder %s23, 0
      %p55 = por %p53, %p54
      %p56 = scmp.ne.s32.totalorder %s45, %s48
      %p57 = scmp.eq.s32.totalorder %s28, 1
      %p58 = por %p56, %p57
      %p59 = scmp.ne.s32.totalorder %s48, %s49
      %p60 = scmp.eq.s32.totalorder %s28, 0
      %p61 = por %p59, %p60
      %p62 = scmp.ne.s32.totalorder %s48, %s49
      %p63 = scmp.eq.s32.totalorder %s29, 1
      %p64 = por %p62, %p63
      %p66 = scmp.ne.s32.totalorder %s49, %s65
      %p67 = scmp.eq.s32.totalorder %s29, 0
      %p68 = por %p66, %p67
      %s70 = sadd.s32 %s69, 1
      %p73 = scmp.eq.s32.totalorder %s23, 1
      %p74 = scmp.ne.s32.totalorder %s69, %s71
      %p75 = scmp.eq.s32.totalorder %s23, 0
      %p76 = por %p74, %p75
      %p77 = scmp.ne.s32.totalorder %s69, %s71
      %p78 = scmp.eq.s32.totalorder %s28, 1
      %p79 = por %p77, %p78
      %p80 = scmp.ne.s32.totalorder %s71, %s72
      %p81 = scmp.eq.s32.totalorder %s28, 0
      %p82 = por %p80, %p81
      %p83 = scmp.ne.s32.totalorder %s71, %s72
      %p84 = scmp.eq.s32.totalorder %s29, 1
      %p85 = por %p83, %p84
      %p87 = scmp.ne.s32.totalorder %s72, %s86
      %p88 = scmp.eq.s32.totalorder %s29, 0
      %p89 = por %p87, %p88
      %s91 = sadd.s32 %s90, 1
      %p94 = scmp.eq.s32.totalorder %s23, 1
      %p95 = scmp.ne.s32.totalorder %s90, %s92
      %p96 = scmp.eq.s32.totalorder %s23, 0
      %p97 = por %p95, %p96
      %p98 = scmp.ne.s32.totalorder %s90, %s92
      %p99 = scmp.eq.s32.totalorder %s28, 1
      %p100 = por %p98, %p99
      %p101 = scmp.ne.s32.totalorder %s92, %s93
      %p102 = scmp.eq.s32.totalorder %s28, 0
      %p103 = por %p101, %p102
      %p104 = scmp.ne.s32.totalorder %s92, %s93
      %p105 = scmp.eq.s32.totalorder %s29, 1
      %p106 = por %p104, %p105
      %p108 = scmp.ne.s32.totalorder %s93, %s107
      %p109 = scmp.eq.s32.totalorder %s29, 0
      %p110 = por %p108, %p109
      %s112 = sadd.s32 %s111, 1
      %p115 = scmp.eq.s32.totalorder %s23, 1
      %p116 = scmp.ne.s32.totalorder %s111, %s113
      %p117 = scmp.eq.s32.totalorder %s23, 0
      %p118 = por %p116, %p117
      %p119 = scmp.ne.s32.totalorder %s111, %s113
      %p120 = scmp.eq.s32.totalorder %s28, 1
      %p121 = por %p119, %p120
      %p122 = scmp.ne.s32.totalorder %s113, %s114
      %p123 = scmp.eq.s32.totalorder %s28, 0
      %p124 = por %p122, %p123
      %p125 = scmp.ne.s32.totalorder %s113, %s114
      %p126 = scmp.eq.s32.totalorder %s29, 1
      %p127 = por %p125, %p126
      %p129 = scmp.ne.s32.totalorder %s114, %s128
      %p130 = scmp.eq.s32.totalorder %s29, 0
      %p131 = por %p129, %p130
      %s133 = sadd.s32 %s132, 1
      %p136 = scmp.eq.s32.totalorder %s23, 1
      %p137 = scmp.ne.s32.totalorder %s132, %s134
      %p138 = scmp.eq.s32.totalorder %s23, 0
      %p139 = por %p137, %p138
      %p140 = scmp.ne.s32.totalorder %s132, %s134
      %p141 = scmp.eq.s32.totalorder %s28, 1
      %p142 = por %p140, %p141
      %p143 = scmp.ne.s32.totalorder %s134, %s135
      %p144 = scmp.eq.s32.totalorder %s28, 0
      %p145 = por %p143, %p144
      %p146 = scmp.ne.s32.totalorder %s134, %s135
      %p147 = scmp.eq.s32.totalorder %s29, 1
      %p148 = por %p146, %p147
      %p150 = scmp.ne.s32.totalorder %s135, %s149
      %p151 = scmp.eq.s32.totalorder %s29, 0
      %p152 = por %p150, %p151
      %s154 = sadd.s32 %s153, 1
      %p157 = scmp.eq.s32.totalorder %s23, 1
      %p158 = scmp.ne.s32.totalorder %s153, %s155
      %p159 = scmp.eq.s32.totalorder %s23, 0
      %p160 = por %p158, %p159
      %p161 = scmp.ne.s32.totalorder %s153, %s155
      %p162 = scmp.eq.s32.totalorder %s28, 1
      %p163 = por %p161, %p162
      %p164 = scmp.ne.s32.totalorder %s155, %s156
      %p165 = scmp.eq.s32.totalorder %s28, 0
      %p166 = por %p164, %p165
      %p167 = scmp.ne.s32.totalorder %s155, %s156
      %p168 = scmp.eq.s32.totalorder %s29, 1
      %p169 = por %p167, %p168
      %p171 = scmp.ne.s32.totalorder %s156, %s170
      %p172 = scmp.eq.s32.totalorder %s29, 0
      %p173 = por %p171, %p172
      %s175 = sadd.s32 %s174, 1
      %p178 = scmp.eq.s32.totalorder %s23, 1
      %p179 = scmp.ne.s32.totalorder %s174, %s176
      %p180 = scmp.eq.s32.totalorder %s23, 0
      %p181 = por %p179, %p180
      %p182 = scmp.ne.s32.totalorder %s174, %s176
      %p183 = scmp.eq.s32.totalorder %s28, 1
      %p184 = por %p182, %p183
      %p185 = scmp.ne.s32.totalorder %s176, %s177
      %p186 = scmp.eq.s32.totalorder %s28, 0
      %p187 = por %p185, %p186
      %p188 = scmp.ne.s32.totalorder %s176, %s177
      %p189 = scmp.eq.s32.totalorder %s29, 1
      %p190 = por %p188, %p189
      %p192 = scmp.ne.s32.totalorder %s177, %s191
      %p193 = scmp.eq.s32.totalorder %s29, 0
      %p194 = por %p192, %p193
      %s195 = ssub.s32 %s31, %s38
      %p196 = scmp.eq.s32.totalorder %s195, 0
      %s198 = sadd.s32 %s197, 1
      %s199 = scalar_select %p196, %s197, %s198
      %p202 = pneg %p196
      %p203 = scmp.eq.s32.totalorder %s23, 1
      %p204 = por %p202, %p203
      %p205 = scmp.ne.s32.totalorder %s197, %s200
      %p206 = scmp.eq.s32.totalorder %s23, 0
      %p207 = por %p205, %p206
      %p208 = scmp.ne.s32.totalorder %s197, %s200
      %p209 = scmp.eq.s32.totalorder %s28, 1
      %p210 = por %p208, %p209
      %p211 = scmp.ne.s32.totalorder %s200, %s201
      %p212 = scmp.eq.s32.totalorder %s28, 0
      %p213 = por %p211, %p212
      %p214 = scmp.ne.s32.totalorder %s200, %s201
      %p215 = scmp.eq.s32.totalorder %s29, 1
      %p216 = por %p214, %p215
      %p218 = scmp.ne.s32.totalorder %s201, %s217
      %p219 = scmp.eq.s32.totalorder %s29, 0
      %p220 = por %p218, %p219
      %s222 = sadd.s32 %s221, 1
      %p225 = scmp.eq.s32.totalorder %s23, 1
      %p226 = scmp.ne.s32.totalorder %s221, %s223
      %p227 = scmp.eq.s32.totalorder %s23, 0
      %p228 = por %p226, %p227
      %p229 = scmp.ne.s32.totalorder %s221, %s223
      %p230 = scmp.eq.s32.totalorder %s28, 1
      %p231 = por %p229, %p230
      %p232 = scmp.ne.s32.totalorder %s223, %s224
      %p233 = scmp.eq.s32.totalorder %s28, 0
      %p234 = por %p232, %p233
      %p235 = scmp.ne.s32.totalorder %s223, %s224
      %p236 = scmp.eq.s32.totalorder %s29, 1
      %p237 = por %p235, %p236
      %p239 = scmp.ne.s32.totalorder %s224, %s238
      %p240 = scmp.eq.s32.totalorder %s29, 0
      %p241 = por %p239, %p240
      %s243 = sadd.s32 %s242, 1
      %p246 = scmp.eq.s32.totalorder %s23, 1
      %p247 = scmp.ne.s32.totalorder %s242, %s244
      %p248 = scmp.eq.s32.totalorder %s23, 0
      %p249 = por %p247, %p248
      %p250 = scmp.ne.s32.totalorder %s242, %s244
      %p251 = scmp.eq.s32.totalorder %s28, 1
      %p252 = por %p250, %p251
      %p253 = scmp.ne.s32.totalorder %s244, %s245
      %p254 = scmp.eq.s32.totalorder %s28, 0
      %p255 = por %p253, %p254
      %p256 = scmp.ne.s32.totalorder %s244, %s245
      %p257 = scmp.eq.s32.totalorder %s29, 1
      %p258 = por %p256, %p257
      %p260 = scmp.ne.s32.totalorder %s245, %s259
      %p261 = scmp.eq.s32.totalorder %s29, 0
      %p262 = por %p260, %p261
      %s264 = sadd.s32 %s263, 1
      %p267 = scmp.eq.s32.totalorder %s23, 1
      %p268 = scmp.ne.s32.totalorder %s263, %s265
      %p269 = scmp.eq.s32.totalorder %s23, 0
      %p270 = por %p268, %p269
      %p271 = scmp.ne.s32.totalorder %s263, %s265
      %p272 = scmp.eq.s32.totalorder %s28, 1
      %p273 = por %p271, %p272
      %p274 = scmp.ne.s32.totalorder %s265, %s266
      %p275 = scmp.eq.s32.totalorder %s28, 0
      %p276 = por %p274, %p275
      %p277 = scmp.ne.s32.totalorder %s265, %s266
      %p278 = scmp.eq.s32.totalorder %s29, 1
      %p279 = por %p277, %p278
      %p281 = scmp.ne.s32.totalorder %s266, %s280
      %p282 = scmp.eq.s32.totalorder %s29, 0
      %p283 = por %p281, %p282
      %s285 = sadd.s32 %s284, 1
      %p288 = scmp.eq.s32.totalorder %s23, 1
      %p289 = scmp.ne.s32.totalorder %s284, %s286
      %p290 = scmp.eq.s32.totalorder %s23, 0
      %p291 = por %p289, %p290
      %p292 = scmp.ne.s32.totalorder %s284, %s286
      %p293 = scmp.eq.s32.totalorder %s28, 1
      %p294 = por %p292, %p293
      %p295 = scmp.ne.s32.totalorder %s286, %s287
      %p296 = scmp.eq.s32.totalorder %s28, 0
      %p297 = por %p295, %p296
      %p298 = scmp.ne.s32.totalorder %s286, %s287
      %p299 = scmp.eq.s32.totalorder %s29, 1
      %p300 = por %p298, %p299
      %p302 = scmp.ne.s32.totalorder %s287, %s301
      %p303 = scmp.eq.s32.totalorder %s29, 0
      %p304 = por %p302, %p303
      %s306 = sadd.s32 %s305, 1
      %p309 = scmp.eq.s32.totalorder %s23, 1
      %p310 = scmp.ne.s32.totalorder %s305, %s307
      %p311 = scmp.eq.s32.totalorder %s23, 0
      %p312 = por %p310, %p311
      %p313 = scmp.ne.s32.totalorder %s305, %s307
      %p314 = scmp.eq.s32.totalorder %s28, 1
      %p315 = por %p313, %p314
      %p316 = scmp.ne.s32.totalorder %s307, %s308
      %p317 = scmp.eq.s32.totalorder %s28, 0
      %p318 = por %p316, %p317
      %p319 = scmp.ne.s32.totalorder %s307, %s308
      %p320 = scmp.eq.s32.totalorder %s29, 1
      %p321 = por %p319, %p320
      %p323 = scmp.ne.s32.totalorder %s308, %s322
      %p324 = scmp.eq.s32.totalorder %s29, 0
      %p325 = por %p323, %p324
      %s327 = sadd.s32 %s326, 1
      %p330 = scmp.eq.s32.totalorder %s23, 1
      %p331 = scmp.ne.s32.totalorder %s326, %s328
      %p332 = scmp.eq.s32.totalorder %s23, 0
      %p333 = por %p331, %p332
      %p334 = scmp.ne.s32.totalorder %s326, %s328
      %p335 = scmp.eq.s32.totalorder %s28, 1
      %p336 = por %p334, %p335
      %p337 = scmp.ne.s32.totalorder %s328, %s329
      %p338 = scmp.eq.s32.totalorder %s28, 0
      %p339 = por %p337, %p338
      %p340 = scmp.ne.s32.totalorder %s328, %s329
      %p341 = scmp.eq.s32.totalorder %s29, 1
      %p342 = por %p340, %p341
      %p344 = scmp.ne.s32.totalorder %s329, %s343
      %p345 = scmp.eq.s32.totalorder %s29, 0
      %p346 = por %p344, %p345
      %s347 = ssub.s32 %s30, %s42
      %s348 = ssub.s32 %s31, %s38
      %s349 = sor.u32 %s347, %s348
      %p350 = scmp.eq.s32.totalorder %s349, 0
      %s352 = sadd.s32 %s351, 1
      %s353 = scalar_select %p350, %s351, %s352
      %p356 = pneg %p350
      %p357 = scmp.eq.s32.totalorder %s23, 1
      %p358 = por %p356, %p357
      %p359 = scmp.ne.s32.totalorder %s351, %s354
      %p360 = scmp.eq.s32.totalorder %s23, 0
      %p361 = por %p359, %p360
      %p362 = scmp.ne.s32.totalorder %s351, %s354
      %p363 = scmp.eq.s32.totalorder %s28, 1
      %p364 = por %p362, %p363
      %p365 = scmp.ne.s32.totalorder %s354, %s355
      %p366 = scmp.eq.s32.totalorder %s28, 0
      %p367 = por %p365, %p366
      %p368 = scmp.ne.s32.totalorder %s354, %s355
      %p369 = scmp.eq.s32.totalorder %s29, 1
      %p370 = por %p368, %p369
      %p372 = scmp.ne.s32.totalorder %s355, %s371
      %p373 = scmp.eq.s32.totalorder %s29, 0
      %p374 = por %p372, %p373
      %p375 = scmp.le.s32.totalorder 1, %s23
      %p376 = scmp.lt.s32.totalorder %s23, 3
      %p377 = pnand %p375, %p376
      %p378 = pneg %p377
      // Predicated region
      $region9: #{transformer_forward.1} parent=5 // pred_check
        _
      $region10: #{transformer_forward.1} parent=5 // pred_check_branch
        %380 = sbr.rel (%p377) target = $region12
      $region11: #{transformer_forward.1} parent=5 // pred_region
        %s381 = ssub.s32 %s23, 1
        // Predicated region
        $region13: #{transformer_forward.1} parent=11 // pred_check
          %p382 = pneg %p82
        $region14: #{transformer_forward.1} parent=11 // pred_check_branch
          %384 = sbr.rel (%p382) target = $region16
        $region15: #{transformer_forward.1} parent=11 // pred_region
          _
        $region16: #{transformer_forward.1} parent=11 // pred_fallthru
          _
        // Predicated region
        $region17: #{transformer_forward.1} parent=11 // pred_check
          %p385 = pneg %p103
        $region18: #{transformer_forward.1} parent=11 // pred_check_branch
          %387 = sbr.rel (%p385) target = $region20
        $region19: #{transformer_forward.1} parent=11 // pred_region
          _
        $region20: #{transformer_forward.1} parent=11 // pred_fallthru
          _
        // Predicated region
        $region21: #{transformer_forward.1} parent=11 // pred_check
          %p388 = pneg %p124
        $region22: #{transformer_forward.1} parent=11 // pred_check_branch
          %390 = sbr.rel (%p388) target = $region24
        $region23: #{transformer_forward.1} parent=11 // pred_region
          _
        $region24: #{transformer_forward.1} parent=11 // pred_fallthru
          _
        // Predicated region
        $region25: #{transformer_forward.1} parent=11 // pred_check
          %p391 = pneg %p145
        $region26: #{transformer_forward.1} parent=11 // pred_check_branch
          %393 = sbr.rel (%p391) target = $region28
        $region27: #{transformer_forward.1} parent=11 // pred_region
          _
        $region28: #{transformer_forward.1} parent=11 // pred_fallthru
          _
        // Predicated region
        $region29: #{transformer_forward.1} parent=11 // pred_check
          %p394 = pneg %p166
        $region30: #{transformer_forward.1} parent=11 // pred_check_branch
          %396 = sbr.rel (%p394) target = $region32
        $region31: #{transformer_forward.1} parent=11 // pred_region
          _
        $region32: #{transformer_forward.1} parent=11 // pred_fallthru
          _
        // Predicated region
        $region33: #{transformer_forward.1} parent=11 // pred_check
          %p397 = pneg %p187
        $region34: #{transformer_forward.1} parent=11 // pred_check_branch
          %399 = sbr.rel (%p397) target = $region36
        $region35: #{transformer_forward.1} parent=11 // pred_region
          _
        $region36: #{transformer_forward.1} parent=11 // pred_fallthru
          _
        // Predicated region
        $region37: #{transformer_forward.1} parent=11 // pred_check
          %p400 = pneg %p213
        $region38: #{transformer_forward.1} parent=11 // pred_check_branch
          %402 = sbr.rel (%p400) target = $region40
        $region39: #{transformer_forward.1} parent=11 // pred_region
          %s403 = smul.u32 8, %s33
          %p404 = scmp.lt.s32.totalorder %s403, 7
          %s405 = scalar_select %p404, %s403, 7
          %s406 = smul.addr %s405, 4
          %s407 = scalar_lea.vmem %s7, %s406
          %s408 = smul.u32 8, %s33
        $region40: #{transformer_forward.1} parent=11 // pred_fallthru
          _
        // Predicated region
        $region41: #{transformer_forward.1} parent=11 // pred_check
          %p409 = pneg %p234
        $region42: #{transformer_forward.1} parent=11 // pred_check_branch
          %411 = sbr.rel (%p409) target = $region44
        $region43: #{transformer_forward.1} parent=11 // pred_region
          _
        $region44: #{transformer_forward.1} parent=11 // pred_fallthru
          _
        // Predicated region
        $region45: #{transformer_forward.1} parent=11 // pred_check
          %p412 = pneg %p255
        $region46: #{transformer_forward.1} parent=11 // pred_check_branch
          %414 = sbr.rel (%p412) target = $region48
        $region47: #{transformer_forward.1} parent=11 // pred_region
          _
        $region48: #{transformer_forward.1} parent=11 // pred_fallthru
          _
        // Predicated region
        $region49: #{transformer_forward.1} parent=11 // pred_check
          %p415 = pneg %p276
        $region50: #{transformer_forward.1} parent=11 // pred_check_branch
          %417 = sbr.rel (%p415) target = $region52
        $region51: #{transformer_forward.1} parent=11 // pred_region
          _
        $region52: #{transformer_forward.1} parent=11 // pred_fallthru
          _
        // Predicated region
        $region53: #{transformer_forward.1} parent=11 // pred_check
          %p418 = pneg %p297
        $region54: #{transformer_forward.1} parent=11 // pred_check_branch
          %420 = sbr.rel (%p418) target = $region56
        $region55: #{transformer_forward.1} parent=11 // pred_region
          _
        $region56: #{transformer_forward.1} parent=11 // pred_fallthru
          _
        // Predicated region
        $region57: #{transformer_forward.1} parent=11 // pred_check
          %p421 = pneg %p318
        $region58: #{transformer_forward.1} parent=11 // pred_check_branch
          %423 = sbr.rel (%p421) target = $region60
        $region59: #{transformer_forward.1} parent=11 // pred_region
          _
        $region60: #{transformer_forward.1} parent=11 // pred_fallthru
          _
        // Predicated region
        $region61: #{transformer_forward.1} parent=11 // pred_check
          %p424 = pneg %p339
        $region62: #{transformer_forward.1} parent=11 // pred_check_branch
          %426 = sbr.rel (%p424) target = $region64
        $region63: #{transformer_forward.1} parent=11 // pred_region
          _
        $region64: #{transformer_forward.1} parent=11 // pred_fallthru
          _
      $region12: #{transformer_forward.1} parent=5 // pred_fallthru
        _
      %p427 = scmp.lt.s32.totalorder %s23, 2
      // Predicated region
      $region65: #{transformer_forward.1} parent=5 // pred_check
        %p428 = pneg %p427
      $region66: #{transformer_forward.1} parent=5 // pred_check_branch
        %430 = sbr.rel (%p428) target = $region68
      $region67: #{transformer_forward.1} parent=5 // pred_region
        // Predicated region
        $region69: #{transformer_forward.1} parent=67 // pred_check
          %p431 = pneg %p55
        $region70: #{transformer_forward.1} parent=67 // pred_check_branch
          %433 = sbr.rel (%p431) target = $region72
        $region71: #{transformer_forward.1} parent=67 // pred_region
          %p434 = scmp.lt.s32.totalorder %s30, 1
          %s435 = scalar_select %p434, %s30, 1
          %s436 = smul.addr %s435, 8
          %s437 = smul.addr %s436, 8
          %s438 = scalar_lea.vmem %s0, %s437
        $region72: #{transformer_forward.1} parent=67 // pred_fallthru
          _
      $region68: #{transformer_forward.1} parent=5 // pred_fallthru
        _
      %p439 = scmp.le.s32.totalorder 1, %s23
      %p440 = scmp.lt.s32.totalorder %s23, 3
      %p441 = pnand %p439, %p440
      %p442 = pneg %p441
      // Predicated region
      $region73: #{transformer_forward.1} parent=5 // pred_check
        _
      $region74: #{transformer_forward.1} parent=5 // pred_check_branch
        %444 = sbr.rel (%p441) target = $region76
      $region75: #{transformer_forward.1} parent=5 // pred_region
        %s445 = ssub.s32 %s23, 1
        %p446 = scmp.lt.s32.totalorder %s32, 1
        %s447 = scalar_select %p446, %s32, 1
        %s448 = smul.addr %s447, 8
        %s449 = smul.addr %s448, 8
        %s450 = scalar_lea.vmem %s0, %s449
        %p451 = pneg %p61
        %p452 = pneg %p58
        %p453 = pneg %p82
        %p454 = pneg %p79
        %p455 = pneg %p103
        %p456 = pneg %p100
        %p457 = pneg %p124
        %p458 = pneg %p121
        %p459 = pneg %p145
        %p460 = pneg %p142
        %p461 = pneg %p166
        %p462 = pneg %p163
        %p463 = pneg %p187
        %p464 = pneg %p184
        %s465 = smul.u32 8, %s33
        %p466 = scmp.lt.s32.totalorder %s465, 7
        %s467 = scalar_select %p466, %s465, 7
        %s468 = smul.addr %s467, 4
        %s469 = scalar_lea.vmem %s7, %s468
        %p470 = pneg %p213
        %p471 = pneg %p210
        %p472 = pneg %p234
        %p473 = pneg %p231
        %p474 = pneg %p255
        %p475 = pneg %p252
        %p476 = pneg %p276
        %p477 = pneg %p273
        %p478 = pneg %p297
        %p479 = pneg %p294
        %p480 = pneg %p318
        %p481 = pneg %p315
        %p482 = pneg %p339
        %p483 = pneg %p336
        %p484 = pneg %p367
        %p485 = pneg %p364
        %s486 = sand.u32 %s354, 1
        %s487 = scalar_lea.sflag [#allocation8], %s486
        %s488 = sand.u32 %s354, 1
        %s489 = smul.addr %s488, 64
        %s490 = scalar_lea.vmem [#allocation7], %s489
        %p491 = scmp.lt.s32.totalorder %s32, 1
        %s492 = scalar_select %p491, %s32, 1
        %s493 = smul.addr %s492, 8
        %s494 = smul.addr %s493, 8
        %s495 = scalar_lea.vmem %s0, %s494
        %s496 = smul.u32 8, %s33
        %p497 = scmp.lt.s32.totalorder %s496, 7
        %s498 = scalar_select %p497, %s496, 7
        %s499 = smul.addr %s498, 4
        %s500 = scalar_lea.vmem %s7, %s499
        %s501 = smul.u32 8, %s33
        %s502 = smul.u32 8, %s33
        %p504 = scmp.eq.s32.totalorder %s33, 0
        // Predicated region
        $region77: #{transformer_forward.1} parent=75 // pred_check
          %p505 = pneg %p504
        $region78: #{transformer_forward.1} parent=75 // pred_check_branch
          %507 = sbr.rel (%p505) target = $region80
        $region79: #{transformer_forward.1} parent=75 // pred_region
          %v508 = vld [vmem:[%s495] sm:$0xff]
          %v509 = vld [vmem:[%s495 + $0x8] sm:$0xff]
          %v510 = vld [vmem:[%s495 + $0x10] sm:$0xff]
          %v511 = vld [vmem:[%s495 + $0x18] sm:$0xff]
          %v512 = vld [vmem:[%s495 + $0x20] sm:$0xff]
          %v513 = vld [vmem:[%s495 + $0x28] sm:$0xff]
          %v514 = vld [vmem:[%s495 + $0x30] sm:$0xff]
          %v515 = vld [vmem:[%s495 + $0x38] sm:$0xff]
          %v516 = vld [vmem:[%s1] sm:$0x1]
          %v517 = vld [vmem:[%s2] sm:$0x1]
          %vm518 = vcmask 261120
          %v519 = vsel %vm518, %v508, 0.0
          %520 = vadd.xlane.f32.xlu0 %v519
          %v521 = vpop.xlane.xlu0 %520
          %v522 = vsel %vm518, %v509, 0.0
          %523 = vadd.xlane.f32.xlu0 %v522
          %v524 = vpop.xlane.xlu0 %523
          %v525 = vsel %vm518, %v510, 0.0
          %526 = vadd.xlane.f32.xlu0 %v525
          %v527 = vpop.xlane.xlu0 %526
          %v528 = vsel %vm518, %v511, 0.0
          %529 = vadd.xlane.f32.xlu0 %v528
          %v530 = vpop.xlane.xlu0 %529
          %v531 = vsel %vm518, %v512, 0.0
          %532 = vadd.xlane.f32.xlu0 %v531
          %v533 = vpop.xlane.xlu0 %532
          %v534 = vsel %vm518, %v513, 0.0
          %535 = vadd.xlane.f32.xlu0 %v534
          %v536 = vpop.xlane.xlu0 %535
          %v537 = vsel %vm518, %v514, 0.0
          %538 = vadd.xlane.f32.xlu0 %v537
          %v539 = vpop.xlane.xlu0 %538
          %v540 = vsel %vm518, %v515, 0.0
          %541 = vadd.xlane.f32.xlu0 %v540
          %v542 = vpop.xlane.xlu0 %541
          %v543 = vrcp.pop 32.0
          %v544 = vmul.f32 %v521, %v543
          %v545 = vmul.f32 %v524, %v543
          %v546 = vmul.f32 %v527, %v543
          %v547 = vmul.f32 %v530, %v543
          %v548 = vmul.f32 %v533, %v543
          %v549 = vmul.f32 %v536, %v543
          %v550 = vmul.f32 %v539, %v543
          %v551 = vmul.f32 %v542, %v543
          %v552 = vsub.f32 %v508, %v544
          %v553 = vsub.f32 %v509, %v545
          %v554 = vsub.f32 %v510, %v546
          %v555 = vsub.f32 %v511, %v547
          %v556 = vsub.f32 %v512, %v548
          %v557 = vsub.f32 %v513, %v549
          %v558 = vsub.f32 %v514, %v550
          %v559 = vsub.f32 %v515, %v551
          %v560 = vmul.f32 %v552, %v552
          %v561 = vmul.f32 %v553, %v553
          %v562 = vmul.f32 %v554, %v554
          %v563 = vmul.f32 %v555, %v555
          %v564 = vmul.f32 %v556, %v556
          %v565 = vmul.f32 %v557, %v557
          %v566 = vmul.f32 %v558, %v558
          %v567 = vmul.f32 %v559, %v559
          %v568 = vsel %vm518, %v560, 0.0
          %569 = vadd.xlane.f32.xlu0 %v568
          %v570 = vpop.xlane.xlu0 %569
          %v571 = vsel %vm518, %v561, 0.0
          %572 = vadd.xlane.f32.xlu0 %v571
          %v573 = vpop.xlane.xlu0 %572
          %v574 = vsel %vm518, %v562, 0.0
          %575 = vadd.xlane.f32.xlu0 %v574
          %v576 = vpop.xlane.xlu0 %575
          %v577 = vsel %vm518, %v563, 0.0
          %578 = vadd.xlane.f32.xlu0 %v577
          %v579 = vpop.xlane.xlu0 %578
          %v580 = vsel %vm518, %v564, 0.0
          %581 = vadd.xlane.f32.xlu0 %v580
          %v582 = vpop.xlane.xlu0 %581
          %v583 = vsel %vm518, %v565, 0.0
          %584 = vadd.xlane.f32.xlu0 %v583
          %v585 = vpop.xlane.xlu0 %584
          %v586 = vsel %vm518, %v566, 0.0
          %587 = vadd.xlane.f32.xlu0 %v586
          %v588 = vpop.xlane.xlu0 %587
          %v589 = vsel %vm518, %v567, 0.0
          %590 = vadd.xlane.f32.xlu0 %v589
          %v591 = vpop.xlane.xlu0 %590
          %v592 = vmul.f32 %v570, %v543
          %v593 = vmul.f32 %v573, %v543
          %v594 = vmul.f32 %v576, %v543
          %v595 = vmul.f32 %v579, %v543
          %v596 = vmul.f32 %v582, %v543
          %v597 = vmul.f32 %v585, %v543
          %v598 = vmul.f32 %v588, %v543
          %v599 = vmul.f32 %v591, %v543
          %v600 = vadd.f32 %v592, 1e-05
          %v601 = vadd.f32 %v593, 1e-05
          %v602 = vadd.f32 %v594, 1e-05
          %v603 = vadd.f32 %v595, 1e-05
          %v604 = vadd.f32 %v596, 1e-05
          %v605 = vadd.f32 %v597, 1e-05
          %v606 = vadd.f32 %v598, 1e-05
          %v607 = vadd.f32 %v599, 1e-05
          %v608 = vrsqrt.pop %v600
          %v609 = vrsqrt.pop %v601
          %v610 = vrsqrt.pop %v602
          %v611 = vrsqrt.pop %v603
          %v612 = vrsqrt.pop %v604
          %v613 = vrsqrt.pop %v605
          %v614 = vrsqrt.pop %v606
          %v615 = vrsqrt.pop %v607
          %v616 = vmul.f32 %v552, %v608
          %v617 = vmul.f32 %v553, %v609
          %v618 = vmul.f32 %v554, %v610
          %v619 = vmul.f32 %v555, %v611
          %v620 = vmul.f32 %v556, %v612
          %v621 = vmul.f32 %v557, %v613
          %v622 = vmul.f32 %v558, %v614
          %v623 = vmul.f32 %v559, %v615
          %v625 = vlaneseq
          %v626 = vshrl.u32 %v625, 7
          %v627 = vsub.s32 0, %v626
          %v628 = vrot.slane %v516, %v627
          %v630 = vmul.f32 %v616, %v628
          %v631 = vmul.f32 %v617, %v628
          %v632 = vmul.f32 %v618, %v628
          %v633 = vmul.f32 %v619, %v628
          %v634 = vmul.f32 %v620, %v628
          %v635 = vmul.f32 %v621, %v628
          %v636 = vmul.f32 %v622, %v628
          %v637 = vmul.f32 %v623, %v628
          %v639 = vlaneseq
          %v640 = vshrl.u32 %v639, 7
          %v641 = vsub.s32 0, %v640
          %v642 = vrot.slane %v517, %v641
          %v644 = vadd.f32 %v630, %v642
          %v645 = vadd.f32 %v631, %v642
          %v646 = vadd.f32 %v632, %v642
          %v647 = vadd.f32 %v633, %v642
          %v648 = vadd.f32 %v634, %v642
          %v649 = vadd.f32 %v635, %v642
          %v650 = vadd.f32 %v636, %v642
          %v651 = vadd.f32 %v637, %v642
          %v652 = vpack.c.bf16 %v645, %v644
          %v653 = vpack.c.bf16 %v647, %v646
          %v654 = vpack.c.bf16 %v649, %v648
          %v655 = vpack.c.bf16 %v651, %v650
          %v660 = vunpack.c.l.b16 %v652
          %v661 = vunpack.c.h.b16 %v652
          %v662 = vunpack.c.l.b16 %v653
          %v663 = vunpack.c.h.b16 %v653
          %v664 = vunpack.c.l.b16 %v654
          %v665 = vunpack.c.h.b16 %v654
          %v666 = vunpack.c.l.b16 %v655
          %v667 = vunpack.c.h.b16 %v655
          %v668 = vpack.c.b16 %v660, %v660
          %v669 = vpack.c.b16 %v661, %v661
          %v670 = vpack.c.b16 %v662, %v662
          %v671 = vpack.c.b16 %v663, %v663
          %v672 = vpack.c.b16 %v664, %v664
          %v673 = vpack.c.b16 %v665, %v665
          %v674 = vpack.c.b16 %v666, %v666
          %v675 = vpack.c.b16 %v667, %v667
          %vm684 = vcmask 257024
          %685 = vst.msk [vmem:[#allocation2] sm:$0xf] %vm684, %v668
          %686 = vst.msk [vmem:[#allocation2 + $0x4] sm:$0xf] %vm684, %v669
          %687 = vst.msk [vmem:[#allocation2 + $0x8] sm:$0xf] %vm684, %v670
          %688 = vst.msk [vmem:[#allocation2 + $0xc] sm:$0xf] %vm684, %v671
          %689 = vst.msk [vmem:[#allocation2 + $0x10] sm:$0xf] %vm684, %v672
          %690 = vst.msk [vmem:[#allocation2 + $0x14] sm:$0xf] %vm684, %v673
          %691 = vst.msk [vmem:[#allocation2 + $0x18] sm:$0xf] %vm684, %v674
          %692 = vst.msk [vmem:[#allocation2 + $0x1c] sm:$0xf] %vm684, %v675
          %v693 = vld [vmem:[%s4] sm:$0xf]
          %v694 = vld [vmem:[%s4 + $0x4] sm:$0xf]
          %v695 = vld [vmem:[%s4 + $0x8] sm:$0xf]
          %v696 = vld [vmem:[%s4 + $0xc] sm:$0xf]
          %v701 = vunpack.c.l.b16 %v693
          %v702 = vunpack.c.l.b16 %v694
          %v703 = vunpack.c.l.b16 %v695
          %v704 = vunpack.c.l.b16 %v696
          %v705 = vpack.c.b16 %v702, %v701
          %v706 = vpack.c.b16 %v704, %v703
          %v710 = vsel %vm518, %v652, 0
          %v713 = vsel %vm518, %v653, 0
          %v716 = vsel %vm518, %v654, 0
          %v719 = vsel %vm518, %v655, 0
          %721 = vmatprep.subr.bf16.mxu0 0
          %722 = vmatpush1.bf16.msra.mxu0 0
          %723 = vmatprep.subr.bf16.mxu0 0
          %724 = vmatpush1.bf16.msra.mxu0 0
          %725 = vmatprep.subr.bf16.mxu0 0
          %726 = vmatpush1.bf16.msra.mxu0 0
          %727 = vmatprep.subr.bf16.mxu0 0
          %728 = vmatpush1.bf16.msra.mxu0 0
          %729 = vmatprep.subr.bf16.mxu0 0
          %730 = vmatpush1.bf16.msra.mxu0 0
          %731 = vmatprep.subr.bf16.mxu0 0
          %732 = vmatpush1.bf16.msra.mxu0 0
          %733 = vmatprep.subr.bf16.mxu0 0
          %734 = vmatpush1.bf16.msra.mxu0 %v706
          %735 = vmatprep.subr.bf16.mxu0 0
          %736 = vmatpush1.bf16.msra.mxu0 %v705
          %737 = vmatprep.subr.bf16.mxu0 0
          %738 = vmatpush2.bf16.msra.mxu0 0
          %739 = vmatprep.subr.bf16.mxu0 0
          %740 = vmatpush2.bf16.msra.mxu0 0
          %741 = vmatprep.subr.bf16.mxu0 0
          %742 = vmatpush2.bf16.msra.mxu0 0
          %743 = vmatprep.subr.bf16.mxu0 0
          %744 = vmatpush2.bf16.msra.mxu0 0
          %745 = vmatprep.subr.bf16.mxu0 0
          %746 = vmatpush2.bf16.msra.mxu0 0
          %747 = vmatprep.subr.bf16.mxu0 0
          %748 = vmatpush2.bf16.msra.mxu0 0
          %749 = vmatprep.subr.bf16.mxu0 0
          %750 = vmatpush2.bf16.msra.mxu0 0
          %751 = vmatprep.subr.bf16.mxu0 0
          %752 = vmatpush2.bf16.msra.mxu0 0
          %753 = vmatprep.mubr.bf16.mxu0 0
          %754 = vmatmul.mubr.bf16.gmra.mxu0 %v710
          %v755 = vpop.f32.mrf.mxu0
          %v756 = vadd.f32 0.0, %v755
          %v757 = vpop.f32.mrf.mxu0
          %v758 = vpop.f32.mrf.mxu0
          %v759 = vadd.f32 0.0, %v758
          %v760 = vpop.f32.mrf.mxu0
          %761 = vmatprep.mubr.bf16.mxu0 0
          %762 = vmatmul.mubr.bf16.gmra.mxu0 %v713
          %v763 = vpop.f32.mrf.mxu0
          %v764 = vadd.f32 0.0, %v763
          %v765 = vpop.f32.mrf.mxu0
          %v766 = vpop.f32.mrf.mxu0
          %v767 = vadd.f32 0.0, %v766
          %v768 = vpop.f32.mrf.mxu0
          %769 = vmatprep.mubr.bf16.mxu0 0
          %770 = vmatmul.mubr.bf16.gmra.mxu0 %v716
          %v771 = vpop.f32.mrf.mxu0
          %v772 = vadd.f32 0.0, %v771
          %v773 = vpop.f32.mrf.mxu0
          %v774 = vpop.f32.mrf.mxu0
          %v775 = vadd.f32 0.0, %v774
          %v776 = vpop.f32.mrf.mxu0
          %777 = vmatprep.mubr.bf16.mxu0 0
          %778 = vmatmul.mubr.bf16.gmra.mxu0 %v719
          %v779 = vpop.f32.mrf.mxu0
          %v780 = vadd.f32 0.0, %v779
          %v781 = vpop.f32.mrf.mxu0
          %v782 = vpop.f32.mrf.mxu0
          %v783 = vadd.f32 0.0, %v782
          %v784 = vpop.f32.mrf.mxu0
          %785 = vdwg.mxu0
          %v786 = vpack.c.bf16 %v759, %v756
          %v787 = vpack.c.bf16 %v767, %v764
          %v788 = vpack.c.bf16 %v775, %v772
          %v789 = vpack.c.bf16 %v783, %v780
          %v794 = vunpack.c.l.b16 %v786
          %v795 = vunpack.c.h.b16 %v786
          %v796 = vunpack.c.l.b16 %v787
          %v797 = vunpack.c.h.b16 %v787
          %v798 = vunpack.c.l.b16 %v788
          %v799 = vunpack.c.h.b16 %v788
          %v800 = vunpack.c.l.b16 %v789
          %v801 = vunpack.c.h.b16 %v789
          %v802 = vpack.c.b16 %v794, %v794
          %v803 = vpack.c.b16 %v795, %v795
          %v804 = vpack.c.b16 %v796, %v796
          %v805 = vpack.c.b16 %v797, %v797
          %v806 = vpack.c.b16 %v798, %v798
          %v807 = vpack.c.b16 %v799, %v799
          %v808 = vpack.c.b16 %v800, %v800
          %v809 = vpack.c.b16 %v801, %v801
          %vm818 = vcmask 60416
          %819 = vst.msk [vmem:[#allocation3] sm:$0xf] %vm818, %v802
          %820 = vst.msk [vmem:[#allocation3 + $0x4] sm:$0xf] %vm818, %v803
          %821 = vst.msk [vmem:[#allocation3 + $0x8] sm:$0xf] %vm818, %v804
          %822 = vst.msk [vmem:[#allocation3 + $0xc] sm:$0xf] %vm818, %v805
          %823 = vst.msk [vmem:[#allocation3 + $0x10] sm:$0xf] %vm818, %v806
          %824 = vst.msk [vmem:[#allocation3 + $0x14] sm:$0xf] %vm818, %v807
          %825 = vst.msk [vmem:[#allocation3 + $0x18] sm:$0xf] %vm818, %v808
          %826 = vst.msk [vmem:[#allocation3 + $0x1c] sm:$0xf] %vm818, %v809
          %827 = vrot.lane.b32.xlu0 %v802, 96
          %v828 = vpop.permute.xlu0 %827
          %829 = vrot.lane.b32.xlu0 %v803, 96
          %v830 = vpop.permute.xlu0 %829
          %831 = vrot.lane.b32.xlu0 %v804, 96
          %v832 = vpop.permute.xlu0 %831
          %833 = vrot.lane.b32.xlu0 %v805, 96
          %v834 = vpop.permute.xlu0 %833
          %835 = vrot.lane.b32.xlu0 %v806, 96
          %v836 = vpop.permute.xlu0 %835
          %837 = vrot.lane.b32.xlu0 %v807, 96
          %v838 = vpop.permute.xlu0 %837
          %839 = vrot.lane.b32.xlu0 %v808, 96
          %v840 = vpop.permute.xlu0 %839
          %841 = vrot.lane.b32.xlu0 %v809, 96
          %v842 = vpop.permute.xlu0 %841
          %851 = vst.msk [vmem:[#allocation4] sm:$0xf] %vm818, %v828
          %852 = vst.msk [vmem:[#allocation4 + $0x4] sm:$0xf] %vm818, %v830
          %853 = vst.msk [vmem:[#allocation4 + $0x8] sm:$0xf] %vm818, %v832
          %854 = vst.msk [vmem:[#allocation4 + $0xc] sm:$0xf] %vm818, %v834
          %855 = vst.msk [vmem:[#allocation4 + $0x10] sm:$0xf] %vm818, %v836
          %856 = vst.msk [vmem:[#allocation4 + $0x14] sm:$0xf] %vm818, %v838
          %857 = vst.msk [vmem:[#allocation4 + $0x18] sm:$0xf] %vm818, %v840
          %858 = vst.msk [vmem:[#allocation4 + $0x1c] sm:$0xf] %vm818, %v842
          %859 = vrot.lane.b32.xlu0 %v802, 120
          %v860 = vpop.permute.xlu0 %859
          %861 = vrot.lane.b32.xlu0 %v803, 120
          %v862 = vpop.permute.xlu0 %861
          %863 = vrot.lane.b32.xlu0 %v804, 120
          %v864 = vpop.permute.xlu0 %863
          %865 = vrot.lane.b32.xlu0 %v805, 120
          %v866 = vpop.permute.xlu0 %865
          %867 = vrot.lane.b32.xlu0 %v806, 120
          %v868 = vpop.permute.xlu0 %867
          %869 = vrot.lane.b32.xlu0 %v807, 120
          %v870 = vpop.permute.xlu0 %869
          %871 = vrot.lane.b32.xlu0 %v808, 120
          %v872 = vpop.permute.xlu0 %871
          %873 = vrot.lane.b32.xlu0 %v809, 120
          %v874 = vpop.permute.xlu0 %873
          %s883 = scalar_lea.vmem [#allocation3], 32
          %884 = vst.msk [vmem:[%s883] sm:$0xf] %vm818, %v860
          %885 = vst.msk [vmem:[%s883 + $0x4] sm:$0xf] %vm818, %v862
          %886 = vst.msk [vmem:[%s883 + $0x8] sm:$0xf] %vm818, %v864
          %887 = vst.msk [vmem:[%s883 + $0xc] sm:$0xf] %vm818, %v866
          %888 = vst.msk [vmem:[%s883 + $0x10] sm:$0xf] %vm818, %v868
          %889 = vst.msk [vmem:[%s883 + $0x14] sm:$0xf] %vm818, %v870
          %890 = vst.msk [vmem:[%s883 + $0x18] sm:$0xf] %vm818, %v872
          %891 = vst.msk [vmem:[%s883 + $0x1c] sm:$0xf] %vm818, %v874
          %892 = vrot.lane.b32.xlu0 %v802, 88
          %v893 = vpop.permute.xlu0 %892
          %894 = vrot.lane.b32.xlu0 %v803, 88
          %v895 = vpop.permute.xlu0 %894
          %896 = vrot.lane.b32.xlu0 %v804, 88
          %v897 = vpop.permute.xlu0 %896
          %898 = vrot.lane.b32.xlu0 %v805, 88
          %v899 = vpop.permute.xlu0 %898
          %900 = vrot.lane.b32.xlu0 %v806, 88
          %v901 = vpop.permute.xlu0 %900
          %902 = vrot.lane.b32.xlu0 %v807, 88
          %v903 = vpop.permute.xlu0 %902
          %904 = vrot.lane.b32.xlu0 %v808, 88
          %v905 = vpop.permute.xlu0 %904
          %906 = vrot.lane.b32.xlu0 %v809, 88
          %v907 = vpop.permute.xlu0 %906
          %s916 = scalar_lea.vmem [#allocation4], 32
          %917 = vst.msk [vmem:[%s916] sm:$0xf] %vm818, %v893
          %918 = vst.msk [vmem:[%s916 + $0x4] sm:$0xf] %vm818, %v895
          %919 = vst.msk [vmem:[%s916 + $0x8] sm:$0xf] %vm818, %v897
          %920 = vst.msk [vmem:[%s916 + $0xc] sm:$0xf] %vm818, %v899
          %921 = vst.msk [vmem:[%s916 + $0x10] sm:$0xf] %vm818, %v901
          %922 = vst.msk [vmem:[%s916 + $0x14] sm:$0xf] %vm818, %v903
          %923 = vst.msk [vmem:[%s916 + $0x18] sm:$0xf] %vm818, %v905
          %924 = vst.msk [vmem:[%s916 + $0x1c] sm:$0xf] %vm818, %v907
          %925 = vrot.lane.b32.xlu0 %v802, 112
          %v926 = vpop.permute.xlu0 %925
          %927 = vrot.lane.b32.xlu0 %v803, 112
          %v928 = vpop.permute.xlu0 %927
          %929 = vrot.lane.b32.xlu0 %v804, 112
          %v930 = vpop.permute.xlu0 %929
          %931 = vrot.lane.b32.xlu0 %v805, 112
          %v932 = vpop.permute.xlu0 %931
          %933 = vrot.lane.b32.xlu0 %v806, 112
          %v934 = vpop.permute.xlu0 %933
          %935 = vrot.lane.b32.xlu0 %v807, 112
          %v936 = vpop.permute.xlu0 %935
          %937 = vrot.lane.b32.xlu0 %v808, 112
          %v938 = vpop.permute.xlu0 %937
          %939 = vrot.lane.b32.xlu0 %v809, 112
          %v940 = vpop.permute.xlu0 %939
          %s949 = scalar_lea.vmem [#allocation3], 64
          %950 = vst.msk [vmem:[%s949] sm:$0xf] %vm818, %v926
          %951 = vst.msk [vmem:[%s949 + $0x4] sm:$0xf] %vm818, %v928
          %952 = vst.msk [vmem:[%s949 + $0x8] sm:$0xf] %vm818, %v930
          %953 = vst.msk [vmem:[%s949 + $0xc] sm:$0xf] %vm818, %v932
          %954 = vst.msk [vmem:[%s949 + $0x10] sm:$0xf] %vm818, %v934
          %955 = vst.msk [vmem:[%s949 + $0x14] sm:$0xf] %vm818, %v936
          %956 = vst.msk [vmem:[%s949 + $0x18] sm:$0xf] %vm818, %v938
          %957 = vst.msk [vmem:[%s949 + $0x1c] sm:$0xf] %vm818, %v940
          %958 = vrot.lane.b32.xlu0 %v802, 80
          %v959 = vpop.permute.xlu0 %958
          %960 = vrot.lane.b32.xlu0 %v803, 80
          %v961 = vpop.permute.xlu0 %960
          %962 = vrot.lane.b32.xlu0 %v804, 80
          %v963 = vpop.permute.xlu0 %962
          %964 = vrot.lane.b32.xlu0 %v805, 80
          %v965 = vpop.permute.xlu0 %964
          %966 = vrot.lane.b32.xlu0 %v806, 80
          %v967 = vpop.permute.xlu0 %966
          %968 = vrot.lane.b32.xlu0 %v807, 80
          %v969 = vpop.permute.xlu0 %968
          %970 = vrot.lane.b32.xlu0 %v808, 80
          %v971 = vpop.permute.xlu0 %970
          %972 = vrot.lane.b32.xlu0 %v809, 80
          %v973 = vpop.permute.xlu0 %972
          %s982 = scalar_lea.vmem [#allocation4], 64
          %983 = vst.msk [vmem:[%s982] sm:$0xf] %vm818, %v959
          %984 = vst.msk [vmem:[%s982 + $0x4] sm:$0xf] %vm818, %v961
          %985 = vst.msk [vmem:[%s982 + $0x8] sm:$0xf] %vm818, %v963
          %986 = vst.msk [vmem:[%s982 + $0xc] sm:$0xf] %vm818, %v965
          %987 = vst.msk [vmem:[%s982 + $0x10] sm:$0xf] %vm818, %v967
          %988 = vst.msk [vmem:[%s982 + $0x14] sm:$0xf] %vm818, %v969
          %989 = vst.msk [vmem:[%s982 + $0x18] sm:$0xf] %vm818, %v971
          %990 = vst.msk [vmem:[%s982 + $0x1c] sm:$0xf] %vm818, %v973
          %991 = vrot.lane.b32.xlu0 %v802, 104
          %v992 = vpop.permute.xlu0 %991
          %993 = vrot.lane.b32.xlu0 %v803, 104
          %v994 = vpop.permute.xlu0 %993
          %995 = vrot.lane.b32.xlu0 %v804, 104
          %v996 = vpop.permute.xlu0 %995
          %997 = vrot.lane.b32.xlu0 %v805, 104
          %v998 = vpop.permute.xlu0 %997
          %999 = vrot.lane.b32.xlu0 %v806, 104
          %v1000 = vpop.permute.xlu0 %999
          %1001 = vrot.lane.b32.xlu0 %v807, 104
          %v1002 = vpop.permute.xlu0 %1001
          %1003 = vrot.lane.b32.xlu0 %v808, 104
          %v1004 = vpop.permute.xlu0 %1003
          %1005 = vrot.lane.b32.xlu0 %v809, 104
          %v1006 = vpop.permute.xlu0 %1005
          %s1015 = scalar_lea.vmem [#allocation3], 96
          %1016 = vst.msk [vmem:[%s1015] sm:$0xf] %vm818, %v992
          %1017 = vst.msk [vmem:[%s1015 + $0x4] sm:$0xf] %vm818, %v994
          %1018 = vst.msk [vmem:[%s1015 + $0x8] sm:$0xf] %vm818, %v996
          %1019 = vst.msk [vmem:[%s1015 + $0xc] sm:$0xf] %vm818, %v998
          %1020 = vst.msk [vmem:[%s1015 + $0x10] sm:$0xf] %vm818, %v1000
          %1021 = vst.msk [vmem:[%s1015 + $0x14] sm:$0xf] %vm818, %v1002
          %1022 = vst.msk [vmem:[%s1015 + $0x18] sm:$0xf] %vm818, %v1004
          %1023 = vst.msk [vmem:[%s1015 + $0x1c] sm:$0xf] %vm818, %v1006
          %1024 = vrot.lane.b32.xlu0 %v802, 72
          %v1025 = vpop.permute.xlu0 %1024
          %1026 = vrot.lane.b32.xlu0 %v803, 72
          %v1027 = vpop.permute.xlu0 %1026
          %1028 = vrot.lane.b32.xlu0 %v804, 72
          %v1029 = vpop.permute.xlu0 %1028
          %1030 = vrot.lane.b32.xlu0 %v805, 72
          %v1031 = vpop.permute.xlu0 %1030
          %1032 = vrot.lane.b32.xlu0 %v806, 72
          %v1033 = vpop.permute.xlu0 %1032
          %1034 = vrot.lane.b32.xlu0 %v807, 72
          %v1035 = vpop.permute.xlu0 %1034
          %1036 = vrot.lane.b32.xlu0 %v808, 72
          %v1037 = vpop.permute.xlu0 %1036
          %1038 = vrot.lane.b32.xlu0 %v809, 72
          %v1039 = vpop.permute.xlu0 %1038
          %s1048 = scalar_lea.vmem [#allocation4], 96
          %1049 = vst.msk [vmem:[%s1048] sm:$0xf] %vm818, %v1025
          %1050 = vst.msk [vmem:[%s1048 + $0x4] sm:$0xf] %vm818, %v1027
          %1051 = vst.msk [vmem:[%s1048 + $0x8] sm:$0xf] %vm818, %v1029
          %1052 = vst.msk [vmem:[%s1048 + $0xc] sm:$0xf] %vm818, %v1031
          %1053 = vst.msk [vmem:[%s1048 + $0x10] sm:$0xf] %vm818, %v1033
          %1054 = vst.msk [vmem:[%s1048 + $0x14] sm:$0xf] %vm818, %v1035
          %1055 = vst.msk [vmem:[%s1048 + $0x18] sm:$0xf] %vm818, %v1037
          %1056 = vst.msk [vmem:[%s1048 + $0x1c] sm:$0xf] %vm818, %v1039
        $region80: #{transformer_forward.1} parent=75 // pred_fallthru
          _
        %s1057 = smul.u32 %s33, 64
        %s1058 = sshra.s32 %s1057, 3
        %s1059 = sand.u32 %s1057, 7
        %s1060 = smul.addr %s1058, 4
        %s1061 = scalar_lea.vmem [#allocation2], %s1060
        %v1062 = vld [vmem:[%s1061] sm:$0xf]
        %v1063 = vld [vmem:[%s1061 + $0x4] sm:$0xf]
        %v1064 = vld [vmem:[%s1061 + $0x8] sm:$0xf]
        %v1065 = vld [vmem:[%s1061 + $0xc] sm:$0xf]
        %v1066 = vld [vmem:[%s1061 + $0x10] sm:$0xf]
        %v1067 = vld [vmem:[%s1061 + $0x14] sm:$0xf]
        %v1068 = vld [vmem:[%s1061 + $0x18] sm:$0xf]
        %v1069 = vld [vmem:[%s1061 + $0x1c] sm:$0xf]
        %v1070 = vld [vmem:[%s3] sm:$0xf]
        %v1071 = vld [vmem:[%s3 + $0x4] sm:$0xf]
        %v1072 = vld [vmem:[%s3 + $0x8] sm:$0xf]
        %v1073 = vld [vmem:[%s3 + $0xc] sm:$0xf]
        %v1082 = vunpack.c.l.b16 %v1062
        %v1083 = vunpack.c.l.b16 %v1063
        %v1084 = vunpack.c.l.b16 %v1064
        %v1085 = vunpack.c.l.b16 %v1065
        %v1086 = vunpack.c.l.b16 %v1066
        %v1087 = vunpack.c.l.b16 %v1067
        %v1088 = vunpack.c.l.b16 %v1068
        %v1089 = vunpack.c.l.b16 %v1069
        %v1090 = vpack.c.b16 %v1083, %v1082
        %v1091 = vpack.c.b16 %v1085, %v1084
        %v1092 = vpack.c.b16 %v1087, %v1086
        %v1093 = vpack.c.b16 %v1089, %v1088
        %v1098 = vunpack.c.l.b16 %v1070
        %v1099 = vunpack.c.l.b16 %v1071
        %v1100 = vunpack.c.l.b16 %v1072
        %v1101 = vunpack.c.l.b16 %v1073
        %v1102 = vpack.c.b16 %v1099, %v1098
        %v1103 = vpack.c.b16 %v1101, %v1100
        %vm1106 = vcmask 261120
        %v1108 = vsel %vm1106, %v1090, 0
        %v1111 = vsel %vm1106, %v1091, 0
        %v1114 = vsel %vm1106, %v1092, 0
        %v1117 = vsel %vm1106, %v1093, 0
        %1119 = vmatprep.subr.bf16.mxu0 0
        %1120 = vmatpush1.bf16.msra.mxu0 0
        %1121 = vmatprep.subr.bf16.mxu0 0
        %1122 = vmatpush1.bf16.msra.mxu0 0
        %1123 = vmatprep.subr.bf16.mxu0 0
        %1124 = vmatpush1.bf16.msra.mxu0 0
        %1125 = vmatprep.subr.bf16.mxu0 0
        %1126 = vmatpush1.bf16.msra.mxu0 0
        %1127 = vmatprep.subr.bf16.mxu0 0
        %1128 = vmatpush1.bf16.msra.mxu0 0
        %1129 = vmatprep.subr.bf16.mxu0 0
        %1130 = vmatpush1.bf16.msra.mxu0 0
        %1131 = vmatprep.subr.bf16.mxu0 0
        %1132 = vmatpush1.bf16.msra.mxu0 %v1103
        %1133 = vmatprep.subr.bf16.mxu0 0
        %1134 = vmatpush1.bf16.msra.mxu0 %v1102
        %1135 = vmatprep.subr.bf16.mxu0 0
        %1136 = vmatpush2.bf16.msra.mxu0 0
        %1137 = vmatprep.subr.bf16.mxu0 0
        %1138 = vmatpush2.bf16.msra.mxu0 0
        %1139 = vmatprep.subr.bf16.mxu0 0
        %1140 = vmatpush2.bf16.msra.mxu0 0
        %1141 = vmatprep.subr.bf16.mxu0 0
        %1142 = vmatpush2.bf16.msra.mxu0 0
        %1143 = vmatprep.subr.bf16.mxu0 0
        %1144 = vmatpush2.bf16.msra.mxu0 0
        %1145 = vmatprep.subr.bf16.mxu0 0
        %1146 = vmatpush2.bf16.msra.mxu0 0
        %1147 = vmatprep.subr.bf16.mxu0 0
        %1148 = vmatpush2.bf16.msra.mxu0 0
        %1149 = vmatprep.subr.bf16.mxu0 0
        %1150 = vmatpush2.bf16.msra.mxu0 0
        %1151 = vmatprep.mubr.bf16.mxu0 0
        %1152 = vmatmul.mubr.bf16.gmra.mxu0 %v1108
        %v1153 = vpop.f32.mrf.mxu0
        %v1154 = vadd.f32 0.0, %v1153
        %v1155 = vpop.f32.mrf.mxu0
        %v1156 = vpop.f32.mrf.mxu0
        %v1157 = vadd.f32 0.0, %v1156
        %v1158 = vpop.f32.mrf.mxu0
        %1159 = vmatprep.mubr.bf16.mxu0 0
        %1160 = vmatmul.mubr.bf16.gmra.mxu0 %v1111
        %v1161 = vpop.f32.mrf.mxu0
        %v1162 = vadd.f32 0.0, %v1161
        %v1163 = vpop.f32.mrf.mxu0
        %v1164 = vpop.f32.mrf.mxu0
        %v1165 = vadd.f32 0.0, %v1164
        %v1166 = vpop.f32.mrf.mxu0
        %1167 = vmatprep.mubr.bf16.mxu0 0
        %1168 = vmatmul.mubr.bf16.gmra.mxu0 %v1114
        %v1169 = vpop.f32.mrf.mxu0
        %v1170 = vadd.f32 0.0, %v1169
        %v1171 = vpop.f32.mrf.mxu0
        %v1172 = vpop.f32.mrf.mxu0
        %v1173 = vadd.f32 0.0, %v1172
        %v1174 = vpop.f32.mrf.mxu0
        %1175 = vmatprep.mubr.bf16.mxu0 0
        %1176 = vmatmul.mubr.bf16.gmra.mxu0 %v1117
        %v1177 = vpop.f32.mrf.mxu0
        %v1178 = vadd.f32 0.0, %v1177
        %v1179 = vpop.f32.mrf.mxu0
        %v1180 = vpop.f32.mrf.mxu0
        %v1181 = vadd.f32 0.0, %v1180
        %v1182 = vpop.f32.mrf.mxu0
        %1183 = vdwg.mxu0
        %v1184 = vpack.c.bf16 %v1157, %v1154
        %v1185 = vpack.c.bf16 %v1165, %v1162
        %v1186 = vpack.c.bf16 %v1173, %v1170
        %v1187 = vpack.c.bf16 %v1181, %v1178
        %v1192 = vunpack.c.l.b16 %v1184
        %v1193 = vunpack.c.h.b16 %v1184
        %v1194 = vunpack.c.l.b16 %v1185
        %v1195 = vunpack.c.h.b16 %v1185
        %v1196 = vunpack.c.l.b16 %v1186
        %v1197 = vunpack.c.h.b16 %v1186
        %v1198 = vunpack.c.l.b16 %v1187
        %v1199 = vunpack.c.h.b16 %v1187
        %v1200 = vpack.c.b16 %v1192, %v1192
        %v1201 = vpack.c.b16 %v1193, %v1193
        %v1202 = vpack.c.b16 %v1194, %v1194
        %v1203 = vpack.c.b16 %v1195, %v1195
        %v1204 = vpack.c.b16 %v1196, %v1196
        %v1205 = vpack.c.b16 %v1197, %v1197
        %v1206 = vpack.c.b16 %v1198, %v1198
        %v1207 = vpack.c.b16 %v1199, %v1199
        %vm1216 = vcmask 60416
        %1217 = vst.msk [vmem:[#allocation5] sm:$0xf] %vm1216, %v1200
        %1218 = vst.msk [vmem:[#allocation5 + $0x4] sm:$0xf] %vm1216, %v1201
        %1219 = vst.msk [vmem:[#allocation5 + $0x8] sm:$0xf] %vm1216, %v1202
        %1220 = vst.msk [vmem:[#allocation5 + $0xc] sm:$0xf] %vm1216, %v1203
        %1221 = vst.msk [vmem:[#allocation5 + $0x10] sm:$0xf] %vm1216, %v1204
        %1222 = vst.msk [vmem:[#allocation5 + $0x14] sm:$0xf] %vm1216, %v1205
        %1223 = vst.msk [vmem:[#allocation5 + $0x18] sm:$0xf] %vm1216, %v1206
        %1224 = vst.msk [vmem:[#allocation5 + $0x1c] sm:$0xf] %vm1216, %v1207
        %1225 = vrot.lane.b32.xlu0 %v1200, 120
        %v1226 = vpop.permute.xlu0 %1225
        %1227 = vrot.lane.b32.xlu0 %v1201, 120
        %v1228 = vpop.permute.xlu0 %1227
        %1229 = vrot.lane.b32.xlu0 %v1202, 120
        %v1230 = vpop.permute.xlu0 %1229
        %1231 = vrot.lane.b32.xlu0 %v1203, 120
        %v1232 = vpop.permute.xlu0 %1231
        %1233 = vrot.lane.b32.xlu0 %v1204, 120
        %v1234 = vpop.permute.xlu0 %1233
        %1235 = vrot.lane.b32.xlu0 %v1205, 120
        %v1236 = vpop.permute.xlu0 %1235
        %1237 = vrot.lane.b32.xlu0 %v1206, 120
        %v1238 = vpop.permute.xlu0 %1237
        %1239 = vrot.lane.b32.xlu0 %v1207, 120
        %v1240 = vpop.permute.xlu0 %1239
        %s1249 = scalar_lea.vmem [#allocation5], 32
        %1250 = vst.msk [vmem:[%s1249] sm:$0xf] %vm1216, %v1226
        %1251 = vst.msk [vmem:[%s1249 + $0x4] sm:$0xf] %vm1216, %v1228
        %1252 = vst.msk [vmem:[%s1249 + $0x8] sm:$0xf] %vm1216, %v1230
        %1253 = vst.msk [vmem:[%s1249 + $0xc] sm:$0xf] %vm1216, %v1232
        %1254 = vst.msk [vmem:[%s1249 + $0x10] sm:$0xf] %vm1216, %v1234
        %1255 = vst.msk [vmem:[%s1249 + $0x14] sm:$0xf] %vm1216, %v1236
        %1256 = vst.msk [vmem:[%s1249 + $0x18] sm:$0xf] %vm1216, %v1238
        %1257 = vst.msk [vmem:[%s1249 + $0x1c] sm:$0xf] %vm1216, %v1240
        %1258 = vrot.lane.b32.xlu0 %v1200, 112
        %v1259 = vpop.permute.xlu0 %1258
        %1260 = vrot.lane.b32.xlu0 %v1201, 112
        %v1261 = vpop.permute.xlu0 %1260
        %1262 = vrot.lane.b32.xlu0 %v1202, 112
        %v1263 = vpop.permute.xlu0 %1262
        %1264 = vrot.lane.b32.xlu0 %v1203, 112
        %v1265 = vpop.permute.xlu0 %1264
        %1266 = vrot.lane.b32.xlu0 %v1204, 112
        %v1267 = vpop.permute.xlu0 %1266
        %1268 = vrot.lane.b32.xlu0 %v1205, 112
        %v1269 = vpop.permute.xlu0 %1268
        %1270 = vrot.lane.b32.xlu0 %v1206, 112
        %v1271 = vpop.permute.xlu0 %1270
        %1272 = vrot.lane.b32.xlu0 %v1207, 112
        %v1273 = vpop.permute.xlu0 %1272
        %s1282 = scalar_lea.vmem [#allocation5], 64
        %1283 = vst.msk [vmem:[%s1282] sm:$0xf] %vm1216, %v1259
        %1284 = vst.msk [vmem:[%s1282 + $0x4] sm:$0xf] %vm1216, %v1261
        %1285 = vst.msk [vmem:[%s1282 + $0x8] sm:$0xf] %vm1216, %v1263
        %1286 = vst.msk [vmem:[%s1282 + $0xc] sm:$0xf] %vm1216, %v1265
        %1287 = vst.msk [vmem:[%s1282 + $0x10] sm:$0xf] %vm1216, %v1267
        %1288 = vst.msk [vmem:[%s1282 + $0x14] sm:$0xf] %vm1216, %v1269
        %1289 = vst.msk [vmem:[%s1282 + $0x18] sm:$0xf] %vm1216, %v1271
        %1290 = vst.msk [vmem:[%s1282 + $0x1c] sm:$0xf] %vm1216, %v1273
        %1291 = vrot.lane.b32.xlu0 %v1200, 104
        %v1292 = vpop.permute.xlu0 %1291
        %1293 = vrot.lane.b32.xlu0 %v1201, 104
        %v1294 = vpop.permute.xlu0 %1293
        %1295 = vrot.lane.b32.xlu0 %v1202, 104
        %v1296 = vpop.permute.xlu0 %1295
        %1297 = vrot.lane.b32.xlu0 %v1203, 104
        %v1298 = vpop.permute.xlu0 %1297
        %1299 = vrot.lane.b32.xlu0 %v1204, 104
        %v1300 = vpop.permute.xlu0 %1299
        %1301 = vrot.lane.b32.xlu0 %v1205, 104
        %v1302 = vpop.permute.xlu0 %1301
        %1303 = vrot.lane.b32.xlu0 %v1206, 104
        %v1304 = vpop.permute.xlu0 %1303
        %1305 = vrot.lane.b32.xlu0 %v1207, 104
        %v1306 = vpop.permute.xlu0 %1305
        %s1315 = scalar_lea.vmem [#allocation5], 96
        %1316 = vst.msk [vmem:[%s1315] sm:$0xf] %vm1216, %v1292
        %1317 = vst.msk [vmem:[%s1315 + $0x4] sm:$0xf] %vm1216, %v1294
        %1318 = vst.msk [vmem:[%s1315 + $0x8] sm:$0xf] %vm1216, %v1296
        %1319 = vst.msk [vmem:[%s1315 + $0xc] sm:$0xf] %vm1216, %v1298
        %1320 = vst.msk [vmem:[%s1315 + $0x10] sm:$0xf] %vm1216, %v1300
        %1321 = vst.msk [vmem:[%s1315 + $0x14] sm:$0xf] %vm1216, %v1302
        %1322 = vst.msk [vmem:[%s1315 + $0x18] sm:$0xf] %vm1216, %v1304
        %1323 = vst.msk [vmem:[%s1315 + $0x1c] sm:$0xf] %vm1216, %v1306
        loop: start=0, step=1, limit=4
        $region81: #{transformer_forward.1} parent=75 // loop_pre_header
          _
        $region82: #{transformer_forward.1} parent=75 // loop_header
          %s1325 = sphi 0, %s1329
          %p1326 = scmp.ge.s32.totalorder %s1325, 4
        $region83: #{transformer_forward.1} parent=75 // loop_header_branch
          %1328 = sbr.rel (%p1326) target = $region87
        $region84: #{transformer_forward.1} parent=75 // loop_body
          %s1330 = smul.u32 %s1325, 8
          %s1331 = smul.addr %s1330, 4
          %s1332 = scalar_lea.vmem [#allocation5], %s1331
          %v1333 = vld [vmem:[%s1332] sm:$0xf]
          %v1334 = vld [vmem:[%s1332 + $0x4] sm:$0xf]
          %v1335 = vld [vmem:[%s1332 + $0x8] sm:$0xf]
          %v1336 = vld [vmem:[%s1332 + $0xc] sm:$0xf]
          %v1337 = vld [vmem:[%s1332 + $0x10] sm:$0xf]
          %v1338 = vld [vmem:[%s1332 + $0x14] sm:$0xf]
          %v1339 = vld [vmem:[%s1332 + $0x18] sm:$0xf]
          %v1340 = vld [vmem:[%s1332 + $0x1c] sm:$0xf]
          %s1341 = smul.addr %s1330, 4
          %s1342 = scalar_lea.vmem [#allocation3], %s1341
          %v1343 = vld [vmem:[%s1342] sm:$0xf]
          %v1344 = vld [vmem:[%s1342 + $0x4] sm:$0xf]
          %v1345 = vld [vmem:[%s1342 + $0x8] sm:$0xf]
          %v1346 = vld [vmem:[%s1342 + $0xc] sm:$0xf]
          %v1347 = vld [vmem:[%s1342 + $0x10] sm:$0xf]
          %v1348 = vld [vmem:[%s1342 + $0x14] sm:$0xf]
          %v1349 = vld [vmem:[%s1342 + $0x18] sm:$0xf]
          %v1350 = vld [vmem:[%s1342 + $0x1c] sm:$0xf]
          %s1351 = smul.addr %s1330, 4
          %s1352 = scalar_lea.vmem %s500, %s1351
          %v1353 = vld [vmem:[%s1352] sm:$0xf]
          %v1354 = vld [vmem:[%s1352 + $0x4] sm:$0xf]
          %v1355 = vld [vmem:[%s1352 + $0x8] sm:$0xf]
          %v1356 = vld [vmem:[%s1352 + $0xc] sm:$0xf]
          %v1357 = vld [vmem:[%s1352 + $0x10] sm:$0xf]
          %v1358 = vld [vmem:[%s1352 + $0x14] sm:$0xf]
          %v1359 = vld [vmem:[%s1352 + $0x18] sm:$0xf]
          %v1360 = vld [vmem:[%s1352 + $0x1c] sm:$0xf]
          %v1361 = vunpack.c.l.bf16 %v1353
          %v1362 = vunpack.c.l.bf16 %v1354
          %v1363 = vunpack.c.l.bf16 %v1355
          %v1364 = vunpack.c.l.bf16 %v1356
          %v1365 = vunpack.c.l.bf16 %v1357
          %v1366 = vunpack.c.l.bf16 %v1358
          %v1367 = vunpack.c.l.bf16 %v1359
          %v1368 = vunpack.c.l.bf16 %v1360
          %v1377 = vunpack.c.l.b16 %v1333
          %v1378 = vunpack.c.l.b16 %v1334
          %v1379 = vunpack.c.l.b16 %v1335
          %v1380 = vunpack.c.l.b16 %v1336
          %v1381 = vunpack.c.l.b16 %v1337
          %v1382 = vunpack.c.l.b16 %v1338
          %v1383 = vunpack.c.l.b16 %v1339
          %v1384 = vunpack.c.l.b16 %v1340
          %v1385 = vpack.c.b16 %v1378, %v1377
          %v1386 = vpack.c.b16 %v1380, %v1379
          %v1387 = vpack.c.b16 %v1382, %v1381
          %v1388 = vpack.c.b16 %v1384, %v1383
          %v1397 = vunpack.c.l.b16 %v1343
          %v1398 = vunpack.c.l.b16 %v1344
          %v1399 = vunpack.c.l.b16 %v1345
          %v1400 = vunpack.c.l.b16 %v1346
          %v1401 = vunpack.c.l.b16 %v1347
          %v1402 = vunpack.c.l.b16 %v1348
          %v1403 = vunpack.c.l.b16 %v1349
          %v1404 = vunpack.c.l.b16 %v1350
          %v1405 = vpack.c.b16 %v1398, %v1397
          %v1406 = vpack.c.b16 %v1400, %v1399
          %v1407 = vpack.c.b16 %v1402, %v1401
          %v1408 = vpack.c.b16 %v1404, %v1403
          %vm1409 = vcmask 64512
          %v1411 = vsel %vm1409, %v1385, 0
          %v1414 = vsel %vm1409, %v1386, 0
          %v1417 = vsel %vm1409, %v1387, 0
          %v1420 = vsel %vm1409, %v1388, 0
          %v1423 = vsel %vm1409, %v1405, 0
          %v1426 = vsel %vm1409, %v1406, 0
          %v1429 = vsel %vm1409, %v1407, 0
          %v1432 = vsel %vm1409, %v1408, 0
          %1434 = vmatprep.subr.bf16.mxu0 0
          %1435 = vmatpush1.bf16.xpose.msra.mxu0 0
          %1436 = vmatprep.subr.bf16.mxu0 0
          %1437 = vmatpush1.bf16.xpose.msra.mxu0 0
          %1438 = vmatprep.subr.bf16.mxu0 0
          %1439 = vmatpush1.bf16.xpose.msra.mxu0 0
          %1440 = vmatprep.subr.bf16.mxu0 0
          %1441 = vmatpush1.bf16.xpose.msra.mxu0 0
          %1442 = vmatprep.subr.bf16.mxu0 0
          %1443 = vmatpush1.bf16.xpose.msra.mxu0 %v1432
          %1444 = vmatprep.subr.bf16.mxu0 0
          %1445 = vmatpush1.bf16.xpose.msra.mxu0 %v1429
          %1446 = vmatprep.subr.bf16.mxu0 0
          %1447 = vmatpush1.bf16.xpose.msra.mxu0 %v1426
          %1448 = vmatprep.subr.bf16.mxu0 0
          %1449 = vmatpush1.bf16.xpose.msra.mxu0 %v1423
          %1450 = vmatprep.subr.bf16.mxu0 0
          %1451 = vmatpush2.bf16.xpose.msra.mxu0 0
          %1452 = vmatprep.subr.bf16.mxu0 0
          %1453 = vmatpush2.bf16.xpose.msra.mxu0 0
          %1454 = vmatprep.subr.bf16.mxu0 0
          %1455 = vmatpush2.bf16.xpose.msra.mxu0 0
          %1456 = vmatprep.subr.bf16.mxu0 0
          %1457 = vmatpush2.bf16.xpose.msra.mxu0 0
          %1458 = vmatprep.subr.bf16.mxu0 0
          %1459 = vmatpush2.bf16.xpose.msra.mxu0 0
          %1460 = vmatprep.subr.bf16.mxu0 0
          %1461 = vmatpush2.bf16.xpose.msra.mxu0 0
          %1462 = vmatprep.subr.bf16.mxu0 0
          %1463 = vmatpush2.bf16.xpose.msra.mxu0 0
          %1464 = vmatprep.subr.bf16.mxu0 0
          %1465 = vmatpush2.bf16.xpose.msra.mxu0 0
          %1466 = vmatprep.mubr.bf16.mxu0 0
          %1467 = vmatmul.mubr.bf16.gmra.mxu0 %v1411
          %v1468 = vpop.f32.mrf.mxu0
          %v1469 = vadd.f32 %v1361, %v1468
          %v1470 = vpop.f32.mrf.mxu0
          %v1471 = vpop.f32.mrf.mxu0
          %v1472 = vadd.f32 %v1362, %v1471
          %v1473 = vpop.f32.mrf.mxu0
          %1474 = vmatprep.mubr.bf16.mxu0 0
          %1475 = vmatmul.mubr.bf16.gmra.mxu0 %v1414
          %v1476 = vpop.f32.mrf.mxu0
          %v1477 = vadd.f32 %v1363, %v1476
          %v1478 = vpop.f32.mrf.mxu0
          %v1479 = vpop.f32.mrf.mxu0
          %v1480 = vadd.f32 %v1364, %v1479
          %v1481 = vpop.f32.mrf.mxu0
          %1482 = vmatprep.mubr.bf16.mxu0 0
          %1483 = vmatmul.mubr.bf16.gmra.mxu0 %v1417
          %v1484 = vpop.f32.mrf.mxu0
          %v1485 = vadd.f32 %v1365, %v1484
          %v1486 = vpop.f32.mrf.mxu0
          %v1487 = vpop.f32.mrf.mxu0
          %v1488 = vadd.f32 %v1366, %v1487
          %v1489 = vpop.f32.mrf.mxu0
          %1490 = vmatprep.mubr.bf16.mxu0 0
          %1491 = vmatmul.mubr.bf16.gmra.mxu0 %v1420
          %v1492 = vpop.f32.mrf.mxu0
          %v1493 = vadd.f32 %v1367, %v1492
          %v1494 = vpop.f32.mrf.mxu0
          %v1495 = vpop.f32.mrf.mxu0
          %v1496 = vadd.f32 %v1368, %v1495
          %v1497 = vpop.f32.mrf.mxu0
          %1498 = vdwg.mxu0
          %vm1499 = vcmask 523264
          %v1500 = vsel %vm1499, %v1469, -inf
          %1501 = vmax.xlane.f32.xlu0 %v1500
          %v1502 = vpop.xlane.xlu0 %1501
          %v1503 = vsel %vm1499, %v1472, -inf
          %1504 = vmax.xlane.f32.xlu0 %v1503
          %v1505 = vpop.xlane.xlu0 %1504
          %v1506 = vsel %vm1499, %v1477, -inf
          %1507 = vmax.xlane.f32.xlu0 %v1506
          %v1508 = vpop.xlane.xlu0 %1507
          %v1509 = vsel %vm1499, %v1480, -inf
          %1510 = vmax.xlane.f32.xlu0 %v1509
          %v1511 = vpop.xlane.xlu0 %1510
          %v1512 = vsel %vm1499, %v1485, -inf
          %1513 = vmax.xlane.f32.xlu0 %v1512
          %v1514 = vpop.xlane.xlu0 %1513
          %v1515 = vsel %vm1499, %v1488, -inf
          %1516 = vmax.xlane.f32.xlu0 %v1515
          %v1517 = vpop.xlane.xlu0 %1516
          %v1518 = vsel %vm1499, %v1493, -inf
          %1519 = vmax.xlane.f32.xlu0 %v1518
          %v1520 = vpop.xlane.xlu0 %1519
          %v1521 = vsel %vm1499, %v1496, -inf
          %1522 = vmax.xlane.f32.xlu0 %v1521
          %v1523 = vpop.xlane.xlu0 %1522
          %v1524 = vsub.f32 %v1469, %v1502
          %v1525 = vsub.f32 %v1472, %v1505
          %v1526 = vsub.f32 %v1477, %v1508
          %v1527 = vsub.f32 %v1480, %v1511
          %v1528 = vsub.f32 %v1485, %v1514
          %v1529 = vsub.f32 %v1488, %v1517
          %v1530 = vsub.f32 %v1493, %v1520
          %v1531 = vsub.f32 %v1496, %v1523
          %v1532 = vmul.f32 %v1524, 1.442695
          %v1533 = vpow.pop %v1532
          %v1534 = vmul.f32 %v1525, 1.442695
          %v1535 = vpow.pop %v1534
          %v1536 = vmul.f32 %v1526, 1.442695
          %v1537 = vpow.pop %v1536
          %v1538 = vmul.f32 %v1527, 1.442695
          %v1539 = vpow.pop %v1538
          %v1540 = vmul.f32 %v1528, 1.442695
          %v1541 = vpow.pop %v1540
          %v1542 = vmul.f32 %v1529, 1.442695
          %v1543 = vpow.pop %v1542
          %v1544 = vmul.f32 %v1530, 1.442695
          %v1545 = vpow.pop %v1544
          %v1546 = vmul.f32 %v1531, 1.442695
          %v1547 = vpow.pop %v1546
          %v1548 = vsel %vm1499, %v1533, 0.0
          %1549 = vadd.xlane.f32.xlu0 %v1548
          %v1550 = vpop.xlane.xlu0 %1549
          %v1551 = vsel %vm1499, %v1535, 0.0
          %1552 = vadd.xlane.f32.xlu0 %v1551
          %v1553 = vpop.xlane.xlu0 %1552
          %v1554 = vsel %vm1499, %v1537, 0.0
          %1555 = vadd.xlane.f32.xlu0 %v1554
          %v1556 = vpop.xlane.xlu0 %1555
          %v1557 = vsel %vm1499, %v1539, 0.0
          %1558 = vadd.xlane.f32.xlu0 %v1557
          %v1559 = vpop.xlane.xlu0 %1558
          %v1560 = vsel %vm1499, %v1541, 0.0
          %1561 = vadd.xlane.f32.xlu0 %v1560
          %v1562 = vpop.xlane.xlu0 %1561
          %v1563 = vsel %vm1499, %v1543, 0.0
          %1564 = vadd.xlane.f32.xlu0 %v1563
          %v1565 = vpop.xlane.xlu0 %1564
          %v1566 = vsel %vm1499, %v1545, 0.0
          %1567 = vadd.xlane.f32.xlu0 %v1566
          %v1568 = vpop.xlane.xlu0 %1567
          %v1569 = vsel %vm1499, %v1547, 0.0
          %1570 = vadd.xlane.f32.xlu0 %v1569
          %v1571 = vpop.xlane.xlu0 %1570
          %v1572 = vrcp.pop %v1550
          %v1573 = vrcp.pop %v1553
          %v1574 = vrcp.pop %v1556
          %v1575 = vrcp.pop %v1559
          %v1576 = vrcp.pop %v1562
          %v1577 = vrcp.pop %v1565
          %v1578 = vrcp.pop %v1568
          %v1579 = vrcp.pop %v1571
          %v1580 = vmul.f32 %v1533, %v1572
          %v1581 = vmul.f32 %v1535, %v1573
          %v1582 = vmul.f32 %v1537, %v1574
          %v1583 = vmul.f32 %v1539, %v1575
          %v1584 = vmul.f32 %v1541, %v1576
          %v1585 = vmul.f32 %v1543, %v1577
          %v1586 = vmul.f32 %v1545, %v1578
          %v1587 = vmul.f32 %v1547, %v1579
          %v1588 = vpack.c.bf16 %v1581, %v1580
          %v1589 = vpack.c.bf16 %v1583, %v1582
          %v1590 = vpack.c.bf16 %v1585, %v1584
          %v1591 = vpack.c.bf16 %v1587, %v1586
          %s1592 = smul.addr %s1330, 4
          %s1593 = scalar_lea.vmem [#allocation4], %s1592
          %v1594 = vld [vmem:[%s1593] sm:$0xf]
          %v1595 = vld [vmem:[%s1593 + $0x4] sm:$0xf]
          %v1596 = vld [vmem:[%s1593 + $0x8] sm:$0xf]
          %v1597 = vld [vmem:[%s1593 + $0xc] sm:$0xf]
          %v1598 = vld [vmem:[%s1593 + $0x10] sm:$0xf]
          %v1599 = vld [vmem:[%s1593 + $0x14] sm:$0xf]
          %v1600 = vld [vmem:[%s1593 + $0x18] sm:$0xf]
          %v1601 = vld [vmem:[%s1593 + $0x1c] sm:$0xf]
          %v1610 = vunpack.c.l.b16 %v1594
          %v1611 = vunpack.c.l.b16 %v1595
          %v1612 = vunpack.c.l.b16 %v1596
          %v1613 = vunpack.c.l.b16 %v1597
          %v1614 = vunpack.c.l.b16 %v1598
          %v1615 = vunpack.c.l.b16 %v1599
          %v1616 = vunpack.c.l.b16 %v1600
          %v1617 = vunpack.c.l.b16 %v1601
          %v1618 = vpack.c.b16 %v1611, %v1610
          %v1619 = vpack.c.b16 %v1613, %v1612
          %v1620 = vpack.c.b16 %v1615, %v1614
          %v1621 = vpack.c.b16 %v1617, %v1616
          %v1627 = vsel %vm1499, %v1588, 0
          %v1630 = vsel %vm1499, %v1589, 0
          %v1633 = vsel %vm1499, %v1590, 0
          %v1636 = vsel %vm1499, %v1591, 0
          %1638 = vmatprep.subr.bf16.mxu0 0
          %1639 = vmatpush1.bf16.msra.mxu0 0
          %1640 = vmatprep.subr.bf16.mxu0 0
          %1641 = vmatpush1.bf16.msra.mxu0 0
          %1642 = vmatprep.subr.bf16.mxu0 0
          %1643 = vmatpush1.bf16.msra.mxu0 0
          %1644 = vmatprep.subr.bf16.mxu0 0
          %1645 = vmatpush1.bf16.msra.mxu0 0
          %1646 = vmatprep.subr.bf16.mxu0 0
          %1647 = vmatpush1.bf16.msra.mxu0 %v1621
          %1648 = vmatprep.subr.bf16.mxu0 0
          %1649 = vmatpush1.bf16.msra.mxu0 %v1620
          %1650 = vmatprep.subr.bf16.mxu0 0
          %1651 = vmatpush1.bf16.msra.mxu0 %v1619
          %1652 = vmatprep.subr.bf16.mxu0 0
          %1653 = vmatpush1.bf16.msra.mxu0 %v1618
          %1654 = vmatprep.subr.bf16.mxu0 0
          %1655 = vmatpush2.bf16.msra.mxu0 0
          %1656 = vmatprep.subr.bf16.mxu0 0
          %1657 = vmatpush2.bf16.msra.mxu0 0
          %1658 = vmatprep.subr.bf16.mxu0 0
          %1659 = vmatpush2.bf16.msra.mxu0 0
          %1660 = vmatprep.subr.bf16.mxu0 0
          %1661 = vmatpush2.bf16.msra.mxu0 0
          %1662 = vmatprep.subr.bf16.mxu0 0
          %1663 = vmatpush2.bf16.msra.mxu0 0
          %1664 = vmatprep.subr.bf16.mxu0 0
          %1665 = vmatpush2.bf16.msra.mxu0 0
          %1666 = vmatprep.subr.bf16.mxu0 0
          %1667 = vmatpush2.bf16.msra.mxu0 0
          %1668 = vmatprep.subr.bf16.mxu0 0
          %1669 = vmatpush2.bf16.msra.mxu0 0
          %1670 = vmatprep.mubr.bf16.mxu0 0
          %1671 = vmatmul.mubr.bf16.gmra.mxu0 %v1627
          %v1672 = vpop.f32.mrf.mxu0
          %v1673 = vadd.f32 0.0, %v1672
          %v1674 = vpop.f32.mrf.mxu0
          %v1675 = vpop.f32.mrf.mxu0
          %v1676 = vadd.f32 0.0, %v1675
          %v1677 = vpop.f32.mrf.mxu0
          %1678 = vmatprep.mubr.bf16.mxu0 0
          %1679 = vmatmul.mubr.bf16.gmra.mxu0 %v1630
          %v1680 = vpop.f32.mrf.mxu0
          %v1681 = vadd.f32 0.0, %v1680
          %v1682 = vpop.f32.mrf.mxu0
          %v1683 = vpop.f32.mrf.mxu0
          %v1684 = vadd.f32 0.0, %v1683
          %v1685 = vpop.f32.mrf.mxu0
          %1686 = vmatprep.mubr.bf16.mxu0 0
          %1687 = vmatmul.mubr.bf16.gmra.mxu0 %v1633
          %v1688 = vpop.f32.mrf.mxu0
          %v1689 = vadd.f32 0.0, %v1688
          %v1690 = vpop.f32.mrf.mxu0
          %v1691 = vpop.f32.mrf.mxu0
          %v1692 = vadd.f32 0.0, %v1691
          %v1693 = vpop.f32.mrf.mxu0
          %1694 = vmatprep.mubr.bf16.mxu0 0
          %1695 = vmatmul.mubr.bf16.gmra.mxu0 %v1636
          %v1696 = vpop.f32.mrf.mxu0
          %v1697 = vadd.f32 0.0, %v1696
          %v1698 = vpop.f32.mrf.mxu0
          %v1699 = vpop.f32.mrf.mxu0
          %v1700 = vadd.f32 0.0, %v1699
          %v1701 = vpop.f32.mrf.mxu0
          %1702 = vdwg.mxu0
          %v1703 = vpack.c.bf16 %v1676, %v1673
          %v1704 = vpack.c.bf16 %v1684, %v1681
          %v1705 = vpack.c.bf16 %v1692, %v1689
          %v1706 = vpack.c.bf16 %v1700, %v1697
          %v1711 = vunpack.c.l.b16 %v1703
          %v1712 = vunpack.c.h.b16 %v1703
          %v1713 = vunpack.c.l.b16 %v1704
          %v1714 = vunpack.c.h.b16 %v1704
          %v1715 = vunpack.c.l.b16 %v1705
          %v1716 = vunpack.c.h.b16 %v1705
          %v1717 = vunpack.c.l.b16 %v1706
          %v1718 = vunpack.c.h.b16 %v1706
          %v1719 = vpack.c.b16 %v1711, %v1711
          %v1720 = vpack.c.b16 %v1712, %v1712
          %v1721 = vpack.c.b16 %v1713, %v1713
          %v1722 = vpack.c.b16 %v1714, %v1714
          %v1723 = vpack.c.b16 %v1715, %v1715
          %v1724 = vpack.c.b16 %v1716, %v1716
          %v1725 = vpack.c.b16 %v1717, %v1717
          %v1726 = vpack.c.b16 %v1718, %v1718
          %s1735 = smul.addr %s1330, 4
          %s1736 = scalar_lea.vmem [#allocation6], %s1735
          %1737 = vst.msk [vmem:[%s1736] sm:$0xf] %vm1216, %v1719
          %1738 = vst.msk [vmem:[%s1736 + $0x4] sm:$0xf] %vm1216, %v1720
          %1739 = vst.msk [vmem:[%s1736 + $0x8] sm:$0xf] %vm1216, %v1721
          %1740 = vst.msk [vmem:[%s1736 + $0xc] sm:$0xf] %vm1216, %v1722
          %1741 = vst.msk [vmem:[%s1736 + $0x10] sm:$0xf] %vm1216, %v1723
          %1742 = vst.msk [vmem:[%s1736 + $0x14] sm:$0xf] %vm1216, %v1724
          %1743 = vst.msk [vmem:[%s1736 + $0x18] sm:$0xf] %vm1216, %v1725
          %1744 = vst.msk [vmem:[%s1736 + $0x1c] sm:$0xf] %vm1216, %v1726
        $region85: #{transformer_forward.1} parent=75 // loop_footer
          %s1329 = sadd.s32 1, %s1325
        $region86: #{transformer_forward.1} parent=75 // loop_footer_branch
          %1324 = sbr.rel target = $region82
        $region87: #{transformer_forward.1} parent=75 // loop_exit
          _
        %v1745 = vld [vmem:[#allocation6] sm:$0xf]
        %v1746 = vld [vmem:[#allocation6 + $0x4] sm:$0xf]
        %v1747 = vld [vmem:[#allocation6 + $0x8] sm:$0xf]
        %v1748 = vld [vmem:[#allocation6 + $0xc] sm:$0xf]
        %v1749 = vld [vmem:[#allocation6 + $0x10] sm:$0xf]
        %v1750 = vld [vmem:[#allocation6 + $0x14] sm:$0xf]
        %v1751 = vld [vmem:[#allocation6 + $0x18] sm:$0xf]
        %v1752 = vld [vmem:[#allocation6 + $0x1c] sm:$0xf]
        %s1753 = scalar_lea.vmem [#allocation6], 32
        %v1754 = vld [vmem:[%s1753] sm:$0xf]
        %v1755 = vld [vmem:[%s1753 + $0x4] sm:$0xf]
        %v1756 = vld [vmem:[%s1753 + $0x8] sm:$0xf]
        %v1757 = vld [vmem:[%s1753 + $0xc] sm:$0xf]
        %v1758 = vld [vmem:[%s1753 + $0x10] sm:$0xf]
        %v1759 = vld [vmem:[%s1753 + $0x14] sm:$0xf]
        %v1760 = vld [vmem:[%s1753 + $0x18] sm:$0xf]
        %v1761 = vld [vmem:[%s1753 + $0x1c] sm:$0xf]
        %s1762 = scalar_lea.vmem [#allocation6], 64
        %v1763 = vld [vmem:[%s1762] sm:$0xf]
        %v1764 = vld [vmem:[%s1762 + $0x4] sm:$0xf]
        %v1765 = vld [vmem:[%s1762 + $0x8] sm:$0xf]
        %v1766 = vld [vmem:[%s1762 + $0xc] sm:$0xf]
        %v1767 = vld [vmem:[%s1762 + $0x10] sm:$0xf]
        %v1768 = vld [vmem:[%s1762 + $0x14] sm:$0xf]
        %v1769 = vld [vmem:[%s1762 + $0x18] sm:$0xf]
        %v1770 = vld [vmem:[%s1762 + $0x1c] sm:$0xf]
        %s1771 = scalar_lea.vmem [#allocation6], 96
        %v1772 = vld [vmem:[%s1771] sm:$0xf]
        %v1773 = vld [vmem:[%s1771 + $0x4] sm:$0xf]
        %v1774 = vld [vmem:[%s1771 + $0x8] sm:$0xf]
        %v1775 = vld [vmem:[%s1771 + $0xc] sm:$0xf]
        %v1776 = vld [vmem:[%s1771 + $0x10] sm:$0xf]
        %v1777 = vld [vmem:[%s1771 + $0x14] sm:$0xf]
        %v1778 = vld [vmem:[%s1771 + $0x18] sm:$0xf]
        %v1779 = vld [vmem:[%s1771 + $0x1c] sm:$0xf]
        %v1788 = vunpack.c.l.b16 %v1745
        %v1789 = vunpack.c.l.b16 %v1746
        %v1790 = vunpack.c.l.b16 %v1747
        %v1791 = vunpack.c.l.b16 %v1748
        %v1792 = vunpack.c.l.b16 %v1749
        %v1793 = vunpack.c.l.b16 %v1750
        %v1794 = vunpack.c.l.b16 %v1751
        %v1795 = vunpack.c.l.b16 %v1752
        %v1796 = vpack.c.b16 %v1789, %v1788
        %v1797 = vpack.c.b16 %v1791, %v1790
        %v1798 = vpack.c.b16 %v1793, %v1792
        %v1799 = vpack.c.b16 %v1795, %v1794
        %v1808 = vunpack.c.l.b16 %v1754
        %v1809 = vunpack.c.l.b16 %v1755
        %v1810 = vunpack.c.l.b16 %v1756
        %v1811 = vunpack.c.l.b16 %v1757
        %v1812 = vunpack.c.l.b16 %v1758
        %v1813 = vunpack.c.l.b16 %v1759
        %v1814 = vunpack.c.l.b16 %v1760
        %v1815 = vunpack.c.l.b16 %v1761
        %v1816 = vpack.c.b16 %v1809, %v1808
        %v1817 = vpack.c.b16 %v1811, %v1810
        %v1818 = vpack.c.b16 %v1813, %v1812
        %v1819 = vpack.c.b16 %v1815, %v1814
        %1820 = vrot.lane.b32.xlu0 %v1816, 8
        %v1821 = vpop.permute.xlu0 %1820
        %1822 = vrot.lane.b32.xlu0 %v1817, 8
        %v1823 = vpop.permute.xlu0 %1822
        %1824 = vrot.lane.b32.xlu0 %v1818, 8
        %v1825 = vpop.permute.xlu0 %1824
        %1826 = vrot.lane.b32.xlu0 %v1819, 8
        %v1827 = vpop.permute.xlu0 %1826
        %v1836 = vunpack.c.l.b16 %v1763
        %v1837 = vunpack.c.l.b16 %v1764
        %v1838 = vunpack.c.l.b16 %v1765
        %v1839 = vunpack.c.l.b16 %v1766
        %v1840 = vunpack.c.l.b16 %v1767
        %v1841 = vunpack.c.l.b16 %v1768
        %v1842 = vunpack.c.l.b16 %v1769
        %v1843 = vunpack.c.l.b16 %v1770
        %v1844 = vpack.c.b16 %v1837, %v1836
        %v1845 = vpack.c.b16 %v1839, %v1838
        %v1846 = vpack.c.b16 %v1841, %v1840
        %v1847 = vpack.c.b16 %v1843, %v1842
        %1848 = vrot.lane.b32.xlu0 %v1844, 16
        %v1849 = vpop.permute.xlu0 %1848
        %1850 = vrot.lane.b32.xlu0 %v1845, 16
        %v1851 = vpop.permute.xlu0 %1850
        %1852 = vrot.lane.b32.xlu0 %v1846, 16
        %v1853 = vpop.permute.xlu0 %1852
        %1854 = vrot.lane.b32.xlu0 %v1847, 16
        %v1855 = vpop.permute.xlu0 %1854
        %v1864 = vunpack.c.l.b16 %v1772
        %v1865 = vunpack.c.l.b16 %v1773
        %v1866 = vunpack.c.l.b16 %v1774
        %v1867 = vunpack.c.l.b16 %v1775
        %v1868 = vunpack.c.l.b16 %v1776
        %v1869 = vunpack.c.l.b16 %v1777
        %v1870 = vunpack.c.l.b16 %v1778
        %v1871 = vunpack.c.l.b16 %v1779
        %v1872 = vpack.c.b16 %v1865, %v1864
        %v1873 = vpack.c.b16 %v1867, %v1866
        %v1874 = vpack.c.b16 %v1869, %v1868
        %v1875 = vpack.c.b16 %v1871, %v1870
        %1876 = vrot.lane.b32.xlu0 %v1872, 24
        %v1877 = vpop.permute.xlu0 %1876
        %1878 = vrot.lane.b32.xlu0 %v1873, 24
        %v1879 = vpop.permute.xlu0 %1878
        %1880 = vrot.lane.b32.xlu0 %v1874, 24
        %v1881 = vpop.permute.xlu0 %1880
        %1882 = vrot.lane.b32.xlu0 %v1875, 24
        %v1883 = vpop.permute.xlu0 %1882
        %vm1884 = vcmask 64512
        %v1887 = vsel %vm1884, %v1796, %v1821
        %v1890 = vsel %vm1884, %v1797, %v1823
        %v1893 = vsel %vm1884, %v1798, %v1825
        %v1896 = vsel %vm1884, %v1799, %v1827
        %vm1897 = vcmask 130048
        %v1899 = vsel %vm1897, %v1887, %v1849
        %v1901 = vsel %vm1897, %v1890, %v1851
        %v1903 = vsel %vm1897, %v1893, %v1853
        %v1905 = vsel %vm1897, %v1896, %v1855
        %vm1906 = vcmask 195584
        %v1908 = vsel %vm1906, %v1899, %v1877
        %v1910 = vsel %vm1906, %v1901, %v1879
        %v1912 = vsel %vm1906, %v1903, %v1881
        %v1914 = vsel %vm1906, %v1905, %v1883
        %v1915 = vld [vmem:[%s5] sm:$0xf]
        %v1916 = vld [vmem:[%s5 + $0x4] sm:$0xf]
        %v1917 = vld [vmem:[%s5 + $0x8] sm:$0xf]
        %v1918 = vld [vmem:[%s5 + $0xc] sm:$0xf]
        %v1923 = vunpack.c.l.b16 %v1915
        %v1924 = vunpack.c.l.b16 %v1916
        %v1925 = vunpack.c.l.b16 %v1917
        %v1926 = vunpack.c.l.b16 %v1918
        %v1927 = vpack.c.b16 %v1924, %v1923
        %v1928 = vpack.c.b16 %v1926, %v1925
        %v1931 = vsel %vm1106, %v1908, 0
        %v1933 = vsel %vm1106, %v1910, 0
        %v1935 = vsel %vm1106, %v1912, 0
        %v1937 = vsel %vm1106, %v1914, 0
        %1939 = vmatprep.subr.bf16.mxu0 0
        %1940 = vmatpush1.bf16.msra.mxu0 0
        %1941 = vmatprep.subr.bf16.mxu0 0
        %1942 = vmatpush1.bf16.msra.mxu0 0
        %1943 = vmatprep.subr.bf16.mxu0 0
        %1944 = vmatpush1.bf16.msra.mxu0 0
        %1945 = vmatprep.subr.bf16.mxu0 0
        %1946 = vmatpush1.bf16.msra.mxu0 0
        %1947 = vmatprep.subr.bf16.mxu0 0
        %1948 = vmatpush1.bf16.msra.mxu0 0
        %1949 = vmatprep.subr.bf16.mxu0 0
        %1950 = vmatpush1.bf16.msra.mxu0 0
        %1951 = vmatprep.subr.bf16.mxu0 0
        %1952 = vmatpush1.bf16.msra.mxu0 %v1928
        %1953 = vmatprep.subr.bf16.mxu0 0
        %1954 = vmatpush1.bf16.msra.mxu0 %v1927
        %1955 = vmatprep.subr.bf16.mxu0 0
        %1956 = vmatpush2.bf16.msra.mxu0 0
        %1957 = vmatprep.subr.bf16.mxu0 0
        %1958 = vmatpush2.bf16.msra.mxu0 0
        %1959 = vmatprep.subr.bf16.mxu0 0
        %1960 = vmatpush2.bf16.msra.mxu0 0
        %1961 = vmatprep.subr.bf16.mxu0 0
        %1962 = vmatpush2.bf16.msra.mxu0 0
        %1963 = vmatprep.subr.bf16.mxu0 0
        %1964 = vmatpush2.bf16.msra.mxu0 0
        %1965 = vmatprep.subr.bf16.mxu0 0
        %1966 = vmatpush2.bf16.msra.mxu0 0
        %1967 = vmatprep.subr.bf16.mxu0 0
        %1968 = vmatpush2.bf16.msra.mxu0 0
        %1969 = vmatprep.subr.bf16.mxu0 0
        %1970 = vmatpush2.bf16.msra.mxu0 0
        %1971 = vmatprep.mubr.bf16.mxu0 0
        %1972 = vmatmul.mubr.bf16.gmra.mxu0 %v1931
        %v1973 = vpop.f32.mrf.mxu0
        %v1974 = vadd.f32 0.0, %v1973
        %v1975 = vpop.f32.mrf.mxu0
        %v1976 = vpop.f32.mrf.mxu0
        %v1977 = vadd.f32 0.0, %v1976
        %v1978 = vpop.f32.mrf.mxu0
        %1979 = vmatprep.mubr.bf16.mxu0 0
        %1980 = vmatmul.mubr.bf16.gmra.mxu0 %v1933
        %v1981 = vpop.f32.mrf.mxu0
        %v1982 = vadd.f32 0.0, %v1981
        %v1983 = vpop.f32.mrf.mxu0
        %v1984 = vpop.f32.mrf.mxu0
        %v1985 = vadd.f32 0.0, %v1984
        %v1986 = vpop.f32.mrf.mxu0
        %1987 = vmatprep.mubr.bf16.mxu0 0
        %1988 = vmatmul.mubr.bf16.gmra.mxu0 %v1935
        %v1989 = vpop.f32.mrf.mxu0
        %v1990 = vadd.f32 0.0, %v1989
        %v1991 = vpop.f32.mrf.mxu0
        %v1992 = vpop.f32.mrf.mxu0
        %v1993 = vadd.f32 0.0, %v1992
        %v1994 = vpop.f32.mrf.mxu0
        %1995 = vmatprep.mubr.bf16.mxu0 0
        %1996 = vmatmul.mubr.bf16.gmra.mxu0 %v1937
        %v1997 = vpop.f32.mrf.mxu0
        %v1998 = vadd.f32 0.0, %v1997
        %v1999 = vpop.f32.mrf.mxu0
        %v2000 = vpop.f32.mrf.mxu0
        %v2001 = vadd.f32 0.0, %v2000
        %v2002 = vpop.f32.mrf.mxu0
        %2003 = vdwg.mxu0
        %s2004 = scalar_lea.vmem %s495, %s1057
        %v2005 = vld [vmem:[%s2004] sm:$0xff]
        %v2006 = vld [vmem:[%s2004 + $0x8] sm:$0xff]
        %v2007 = vld [vmem:[%s2004 + $0x10] sm:$0xff]
        %v2008 = vld [vmem:[%s2004 + $0x18] sm:$0xff]
        %v2009 = vld [vmem:[%s2004 + $0x20] sm:$0xff]
        %v2010 = vld [vmem:[%s2004 + $0x28] sm:$0xff]
        %v2011 = vld [vmem:[%s2004 + $0x30] sm:$0xff]
        %v2012 = vld [vmem:[%s2004 + $0x38] sm:$0xff]
        %v2013 = vadd.f32 %v2005, %v1974
        %v2014 = vadd.f32 %v2006, %v1977
        %v2015 = vadd.f32 %v2007, %v1982
        %v2016 = vadd.f32 %v2008, %v1985
        %v2017 = vadd.f32 %v2009, %v1990
        %v2018 = vadd.f32 %v2010, %v1993
        %v2019 = vadd.f32 %v2011, %v1998
        %v2020 = vadd.f32 %v2012, %v2001
        %v2021 = vld [vmem:[%s6] sm:$0x1]
        %v2023 = vlaneseq
        %v2024 = vshrl.u32 %v2023, 7
        %v2025 = vsub.s32 0, %v2024
        %v2026 = vrot.slane %v2021, %v2025
        %v2028 = vadd.f32 %v2013, %v2026
        %v2029 = vadd.f32 %v2014, %v2026
        %v2030 = vadd.f32 %v2015, %v2026
        %v2031 = vadd.f32 %v2016, %v2026
        %v2032 = vadd.f32 %v2017, %v2026
        %v2033 = vadd.f32 %v2018, %v2026
        %v2034 = vadd.f32 %v2019, %v2026
        %v2035 = vadd.f32 %v2020, %v2026
        %v2036 = vld [vmem:[%s8] sm:$0x1]
        %v2037 = vld [vmem:[%s9] sm:$0x1]
        %v2038 = vsel %vm1106, %v2028, 0.0
        %2039 = vadd.xlane.f32.xlu0 %v2038
        %v2040 = vpop.xlane.xlu0 %2039
        %v2041 = vsel %vm1106, %v2029, 0.0
        %2042 = vadd.xlane.f32.xlu0 %v2041
        %v2043 = vpop.xlane.xlu0 %2042
        %v2044 = vsel %vm1106, %v2030, 0.0
        %2045 = vadd.xlane.f32.xlu0 %v2044
        %v2046 = vpop.xlane.xlu0 %2045
        %v2047 = vsel %vm1106, %v2031, 0.0
        %2048 = vadd.xlane.f32.xlu0 %v2047
        %v2049 = vpop.xlane.xlu0 %2048
        %v2050 = vsel %vm1106, %v2032, 0.0
        %2051 = vadd.xlane.f32.xlu0 %v2050
        %v2052 = vpop.xlane.xlu0 %2051
        %v2053 = vsel %vm1106, %v2033, 0.0
        %2054 = vadd.xlane.f32.xlu0 %v2053
        %v2055 = vpop.xlane.xlu0 %2054
        %v2056 = vsel %vm1106, %v2034, 0.0
        %2057 = vadd.xlane.f32.xlu0 %v2056
        %v2058 = vpop.xlane.xlu0 %2057
        %v2059 = vsel %vm1106, %v2035, 0.0
        %2060 = vadd.xlane.f32.xlu0 %v2059
        %v2061 = vpop.xlane.xlu0 %2060
        %v2062 = vrcp.pop 32.0
        %v2063 = vmul.f32 %v2040, %v2062
        %v2064 = vmul.f32 %v2043, %v2062
        %v2065 = vmul.f32 %v2046, %v2062
        %v2066 = vmul.f32 %v2049, %v2062
        %v2067 = vmul.f32 %v2052, %v2062
        %v2068 = vmul.f32 %v2055, %v2062
        %v2069 = vmul.f32 %v2058, %v2062
        %v2070 = vmul.f32 %v2061, %v2062
        %v2071 = vsub.f32 %v2028, %v2063
        %v2072 = vsub.f32 %v2029, %v2064
        %v2073 = vsub.f32 %v2030, %v2065
        %v2074 = vsub.f32 %v2031, %v2066
        %v2075 = vsub.f32 %v2032, %v2067
        %v2076 = vsub.f32 %v2033, %v2068
        %v2077 = vsub.f32 %v2034, %v2069
        %v2078 = vsub.f32 %v2035, %v2070
        %v2079 = vmul.f32 %v2071, %v2071
        %v2080 = vmul.f32 %v2072, %v2072
        %v2081 = vmul.f32 %v2073, %v2073
        %v2082 = vmul.f32 %v2074, %v2074
        %v2083 = vmul.f32 %v2075, %v2075
        %v2084 = vmul.f32 %v2076, %v2076
        %v2085 = vmul.f32 %v2077, %v2077
        %v2086 = vmul.f32 %v2078, %v2078
        %v2087 = vsel %vm1106, %v2079, 0.0
        %2088 = vadd.xlane.f32.xlu0 %v2087
        %v2089 = vpop.xlane.xlu0 %2088
        %v2090 = vsel %vm1106, %v2080, 0.0
        %2091 = vadd.xlane.f32.xlu0 %v2090
        %v2092 = vpop.xlane.xlu0 %2091
        %v2093 = vsel %vm1106, %v2081, 0.0
        %2094 = vadd.xlane.f32.xlu0 %v2093
        %v2095 = vpop.xlane.xlu0 %2094
        %v2096 = vsel %vm1106, %v2082, 0.0
        %2097 = vadd.xlane.f32.xlu0 %v2096
        %v2098 = vpop.xlane.xlu0 %2097
        %v2099 = vsel %vm1106, %v2083, 0.0
        %2100 = vadd.xlane.f32.xlu0 %v2099
        %v2101 = vpop.xlane.xlu0 %2100
        %v2102 = vsel %vm1106, %v2084, 0.0
        %2103 = vadd.xlane.f32.xlu0 %v2102
        %v2104 = vpop.xlane.xlu0 %2103
        %v2105 = vsel %vm1106, %v2085, 0.0
        %2106 = vadd.xlane.f32.xlu0 %v2105
        %v2107 = vpop.xlane.xlu0 %2106
        %v2108 = vsel %vm1106, %v2086, 0.0
        %2109 = vadd.xlane.f32.xlu0 %v2108
        %v2110 = vpop.xlane.xlu0 %2109
        %v2111 = vmul.f32 %v2089, %v2062
        %v2112 = vmul.f32 %v2092, %v2062
        %v2113 = vmul.f32 %v2095, %v2062
        %v2114 = vmul.f32 %v2098, %v2062
        %v2115 = vmul.f32 %v2101, %v2062
        %v2116 = vmul.f32 %v2104, %v2062
        %v2117 = vmul.f32 %v2107, %v2062
        %v2118 = vmul.f32 %v2110, %v2062
        %v2119 = vadd.f32 %v2111, 1e-05
        %v2120 = vadd.f32 %v2112, 1e-05
        %v2121 = vadd.f32 %v2113, 1e-05
        %v2122 = vadd.f32 %v2114, 1e-05
        %v2123 = vadd.f32 %v2115, 1e-05
        %v2124 = vadd.f32 %v2116, 1e-05
        %v2125 = vadd.f32 %v2117, 1e-05
        %v2126 = vadd.f32 %v2118, 1e-05
        %v2127 = vrsqrt.pop %v2119
        %v2128 = vrsqrt.pop %v2120
        %v2129 = vrsqrt.pop %v2121
        %v2130 = vrsqrt.pop %v2122
        %v2131 = vrsqrt.pop %v2123
        %v2132 = vrsqrt.pop %v2124
        %v2133 = vrsqrt.pop %v2125
        %v2134 = vrsqrt.pop %v2126
        %v2135 = vmul.f32 %v2071, %v2127
        %v2136 = vmul.f32 %v2072, %v2128
        %v2137 = vmul.f32 %v2073, %v2129
        %v2138 = vmul.f32 %v2074, %v2130
        %v2139 = vmul.f32 %v2075, %v2131
        %v2140 = vmul.f32 %v2076, %v2132
        %v2141 = vmul.f32 %v2077, %v2133
        %v2142 = vmul.f32 %v2078, %v2134
        %v2144 = vlaneseq
        %v2145 = vshrl.u32 %v2144, 7
        %v2146 = vsub.s32 0, %v2145
        %v2147 = vrot.slane %v2036, %v2146
        %v2149 = vmul.f32 %v2135, %v2147
        %v2150 = vmul.f32 %v2136, %v2147
        %v2151 = vmul.f32 %v2137, %v2147
        %v2152 = vmul.f32 %v2138, %v2147
        %v2153 = vmul.f32 %v2139, %v2147
        %v2154 = vmul.f32 %v2140, %v2147
        %v2155 = vmul.f32 %v2141, %v2147
        %v2156 = vmul.f32 %v2142, %v2147
        %v2158 = vlaneseq
        %v2159 = vshrl.u32 %v2158, 7
        %v2160 = vsub.s32 0, %v2159
        %v2161 = vrot.slane %v2037, %v2160
        %v2163 = vadd.f32 %v2149, %v2161
        %v2164 = vadd.f32 %v2150, %v2161
        %v2165 = vadd.f32 %v2151, %v2161
        %v2166 = vadd.f32 %v2152, %v2161
        %v2167 = vadd.f32 %v2153, %v2161
        %v2168 = vadd.f32 %v2154, %v2161
        %v2169 = vadd.f32 %v2155, %v2161
        %v2170 = vadd.f32 %v2156, %v2161
        %v2171 = vpack.c.bf16 %v2164, %v2163
        %v2172 = vpack.c.bf16 %v2166, %v2165
        %v2173 = vpack.c.bf16 %v2168, %v2167
        %v2174 = vpack.c.bf16 %v2170, %v2169
        %v2175 = vld [vmem:[%s10] sm:$0xf]
        %v2176 = vld [vmem:[%s10 + $0x4] sm:$0xf]
        %v2177 = vld [vmem:[%s10 + $0x8] sm:$0xf]
        %v2178 = vld [vmem:[%s10 + $0xc] sm:$0xf]
        %v2179 = vld [vmem:[%s11] sm:$0x1]
        %v2181 = vlaneseq
        %v2182 = vshrl.u32 %v2181, 7
        %v2183 = vsub.s32 0, %v2182
        %v2184 = vrot.slane %v2179, %v2183
        %v2190 = vunpack.c.l.b16 %v2175
        %v2191 = vunpack.c.l.b16 %v2176
        %v2192 = vunpack.c.l.b16 %v2177
        %v2193 = vunpack.c.l.b16 %v2178
        %v2194 = vpack.c.b16 %v2191, %v2190
        %v2195 = vpack.c.b16 %v2193, %v2192
        %v2199 = vsel %vm1106, %v2171, 0
        %v2202 = vsel %vm1106, %v2172, 0
        %v2205 = vsel %vm1106, %v2173, 0
        %v2208 = vsel %vm1106, %v2174, 0
        %2210 = vmatprep.subr.bf16.mxu0 0
        %2211 = vmatpush1.bf16.msra.mxu0 0
        %2212 = vmatprep.subr.bf16.mxu0 0
        %2213 = vmatpush1.bf16.msra.mxu0 0
        %2214 = vmatprep.subr.bf16.mxu0 0
        %2215 = vmatpush1.bf16.msra.mxu0 0
        %2216 = vmatprep.subr.bf16.mxu0 0
        %2217 = vmatpush1.bf16.msra.mxu0 0
        %2218 = vmatprep.subr.bf16.mxu0 0
        %2219 = vmatpush1.bf16.msra.mxu0 0
        %2220 = vmatprep.subr.bf16.mxu0 0
        %2221 = vmatpush1.bf16.msra.mxu0 0
        %2222 = vmatprep.subr.bf16.mxu0 0
        %2223 = vmatpush1.bf16.msra.mxu0 %v2195
        %2224 = vmatprep.subr.bf16.mxu0 0
        %2225 = vmatpush1.bf16.msra.mxu0 %v2194
        %2226 = vmatprep.subr.bf16.mxu0 0
        %2227 = vmatpush2.bf16.msra.mxu0 0
        %2228 = vmatprep.subr.bf16.mxu0 0
        %2229 = vmatpush2.bf16.msra.mxu0 0
        %2230 = vmatprep.subr.bf16.mxu0 0
        %2231 = vmatpush2.bf16.msra.mxu0 0
        %2232 = vmatprep.subr.bf16.mxu0 0
        %2233 = vmatpush2.bf16.msra.mxu0 0
        %2234 = vmatprep.subr.bf16.mxu0 0
        %2235 = vmatpush2.bf16.msra.mxu0 0
        %2236 = vmatprep.subr.bf16.mxu0 0
        %2237 = vmatpush2.bf16.msra.mxu0 0
        %2238 = vmatprep.subr.bf16.mxu0 0
        %2239 = vmatpush2.bf16.msra.mxu0 0
        %2240 = vmatprep.subr.bf16.mxu0 0
        %2241 = vmatpush2.bf16.msra.mxu0 0
        %2242 = vmatprep.mubr.bf16.mxu0 0
        %2243 = vmatmul.mubr.bf16.gmra.mxu0 %v2199
        %v2244 = vpop.f32.mrf.mxu0
        %v2245 = vadd.f32 %v2184, %v2244
        %v2246 = vpop.f32.mrf.mxu0
        %v2247 = vpop.f32.mrf.mxu0
        %v2248 = vadd.f32 %v2184, %v2247
        %v2249 = vpop.f32.mrf.mxu0
        %2250 = vmatprep.mubr.bf16.mxu0 0
        %2251 = vmatmul.mubr.bf16.gmra.mxu0 %v2202
        %v2252 = vpop.f32.mrf.mxu0
        %v2253 = vadd.f32 %v2184, %v2252
        %v2254 = vpop.f32.mrf.mxu0
        %v2255 = vpop.f32.mrf.mxu0
        %v2256 = vadd.f32 %v2184, %v2255
        %v2257 = vpop.f32.mrf.mxu0
        %2258 = vmatprep.mubr.bf16.mxu0 0
        %2259 = vmatmul.mubr.bf16.gmra.mxu0 %v2205
        %v2260 = vpop.f32.mrf.mxu0
        %v2261 = vadd.f32 %v2184, %v2260
        %v2262 = vpop.f32.mrf.mxu0
        %v2263 = vpop.f32.mrf.mxu0
        %v2264 = vadd.f32 %v2184, %v2263
        %v2265 = vpop.f32.mrf.mxu0
        %2266 = vmatprep.mubr.bf16.mxu0 0
        %2267 = vmatmul.mubr.bf16.gmra.mxu0 %v2208
        %v2268 = vpop.f32.mrf.mxu0
        %v2269 = vadd.f32 %v2184, %v2268
        %v2270 = vpop.f32.mrf.mxu0
        %v2271 = vpop.f32.mrf.mxu0
        %v2272 = vadd.f32 %v2184, %v2271
        %v2273 = vpop.f32.mrf.mxu0
        %2274 = vdwg.mxu0
        %v2275 = vmul.f32 %v2245, 0.5
        %v2276 = vmul.f32 %v2248, 0.5
        %v2277 = vmul.f32 %v2253, 0.5
        %v2278 = vmul.f32 %v2256, 0.5
        %v2279 = vmul.f32 %v2261, 0.5
        %v2280 = vmul.f32 %v2264, 0.5
        %v2281 = vmul.f32 %v2269, 0.5
        %v2282 = vmul.f32 %v2272, 0.5
        %v2283 = vmul.f32 %v2245, 0.70710677
        %v2284 = vmul.f32 %v2248, 0.70710677
        %v2285 = vmul.f32 %v2253, 0.70710677
        %v2286 = vmul.f32 %v2256, 0.70710677
        %v2287 = vmul.f32 %v2261, 0.70710677
        %v2288 = vmul.f32 %v2264, 0.70710677
        %v2289 = vmul.f32 %v2269, 0.70710677
        %v2290 = vmul.f32 %v2272, 0.70710677
        %v2291 = verf.f32.pop %v2283
        %v2292 = verf.f32.pop %v2284
        %v2293 = verf.f32.pop %v2285
        %v2294 = verf.f32.pop %v2286
        %v2295 = verf.f32.pop %v2287
        %v2296 = verf.f32.pop %v2288
        %v2297 = verf.f32.pop %v2289
        %v2298 = verf.f32.pop %v2290
        %v2299 = vadd.f32 %v2291, 1.0
        %v2300 = vadd.f32 %v2292, 1.0
        %v2301 = vadd.f32 %v2293, 1.0
        %v2302 = vadd.f32 %v2294, 1.0
        %v2303 = vadd.f32 %v2295, 1.0
        %v2304 = vadd.f32 %v2296, 1.0
        %v2305 = vadd.f32 %v2297, 1.0
        %v2306 = vadd.f32 %v2298, 1.0
        %v2307 = vmul.f32 %v2275, %v2299
        %v2308 = vmul.f32 %v2276, %v2300
        %v2309 = vmul.f32 %v2277, %v2301
        %v2310 = vmul.f32 %v2278, %v2302
        %v2311 = vmul.f32 %v2279, %v2303
        %v2312 = vmul.f32 %v2280, %v2304
        %v2313 = vmul.f32 %v2281, %v2305
        %v2314 = vmul.f32 %v2282, %v2306
        %v2315 = vpack.c.bf16 %v2308, %v2307
        %v2316 = vpack.c.bf16 %v2310, %v2309
        %v2317 = vpack.c.bf16 %v2312, %v2311
        %v2318 = vpack.c.bf16 %v2314, %v2313
        %v2319 = vld [vmem:[%s12] sm:$0xf]
        %v2320 = vld [vmem:[%s12 + $0x4] sm:$0xf]
        %v2321 = vld [vmem:[%s12 + $0x8] sm:$0xf]
        %v2322 = vld [vmem:[%s12 + $0xc] sm:$0xf]
        %v2323 = vld [vmem:[%s12 + $0x10] sm:$0xf]
        %v2324 = vld [vmem:[%s12 + $0x14] sm:$0xf]
        %v2325 = vld [vmem:[%s12 + $0x18] sm:$0xf]
        %v2326 = vld [vmem:[%s12 + $0x1c] sm:$0xf]
        %v2327 = vld [vmem:[%s12 + $0x20] sm:$0xf]
        %v2328 = vld [vmem:[%s12 + $0x24] sm:$0xf]
        %v2329 = vld [vmem:[%s12 + $0x28] sm:$0xf]
        %v2330 = vld [vmem:[%s12 + $0x2c] sm:$0xf]
        %v2331 = vld [vmem:[%s12 + $0x30] sm:$0xf]
        %v2332 = vld [vmem:[%s12 + $0x34] sm:$0xf]
        %v2333 = vld [vmem:[%s12 + $0x38] sm:$0xf]
        %v2334 = vld [vmem:[%s12 + $0x3c] sm:$0xf]
        %v2335 = vld [vmem:[%s13] sm:$0x1]
        %v2337 = vlaneseq
        %v2338 = vshrl.u32 %v2337, 7
        %v2339 = vsub.s32 0, %v2338
        %v2340 = vrot.slane %v2335, %v2339
        %v2358 = vunpack.c.l.b16 %v2319
        %v2359 = vunpack.c.l.b16 %v2320
        %v2360 = vunpack.c.l.b16 %v2321
        %v2361 = vunpack.c.l.b16 %v2322
        %v2362 = vunpack.c.l.b16 %v2323
        %v2363 = vunpack.c.l.b16 %v2324
        %v2364 = vunpack.c.l.b16 %v2325
        %v2365 = vunpack.c.l.b16 %v2326
        %v2366 = vunpack.c.l.b16 %v2327
        %v2367 = vunpack.c.l.b16 %v2328
        %v2368 = vunpack.c.l.b16 %v2329
        %v2369 = vunpack.c.l.b16 %v2330
        %v2370 = vunpack.c.l.b16 %v2331
        %v2371 = vunpack.c.l.b16 %v2332
        %v2372 = vunpack.c.l.b16 %v2333
        %v2373 = vunpack.c.l.b16 %v2334
        %v2374 = vpack.c.b16 %v2359, %v2358
        %v2375 = vpack.c.b16 %v2361, %v2360
        %v2376 = vpack.c.b16 %v2363, %v2362
        %v2377 = vpack.c.b16 %v2365, %v2364
        %v2378 = vpack.c.b16 %v2367, %v2366
        %v2379 = vpack.c.b16 %v2369, %v2368
        %v2380 = vpack.c.b16 %v2371, %v2370
        %v2381 = vpack.c.b16 %v2373, %v2372
        %2390 = vmatprep.subr.bf16.mxu0 0
        %2391 = vmatpush1.bf16.msra.mxu0 %v2381
        %2392 = vmatprep.subr.bf16.mxu0 0
        %2393 = vmatpush1.bf16.msra.mxu0 %v2380
        %2394 = vmatprep.subr.bf16.mxu0 0
        %2395 = vmatpush1.bf16.msra.mxu0 %v2379
        %2396 = vmatprep.subr.bf16.mxu0 0
        %2397 = vmatpush1.bf16.msra.mxu0 %v2378
        %2398 = vmatprep.subr.bf16.mxu0 0
        %2399 = vmatpush1.bf16.msra.mxu0 %v2377
        %2400 = vmatprep.subr.bf16.mxu0 0
        %2401 = vmatpush1.bf16.msra.mxu0 %v2376
        %2402 = vmatprep.subr.bf16.mxu0 0
        %2403 = vmatpush1.bf16.msra.mxu0 %v2375
        %2404 = vmatprep.subr.bf16.mxu0 0
        %2405 = vmatpush1.bf16.msra.mxu0 %v2374
        %2406 = vmatprep.subr.bf16.mxu0 0
        %2407 = vmatpush2.bf16.msra.mxu0 0
        %2408 = vmatprep.subr.bf16.mxu0 0
        %2409 = vmatpush2.bf16.msra.mxu0 0
        %2410 = vmatprep.subr.bf16.mxu0 0
        %2411 = vmatpush2.bf16.msra.mxu0 0
        %2412 = vmatprep.subr.bf16.mxu0 0
        %2413 = vmatpush2.bf16.msra.mxu0 0
        %2414 = vmatprep.subr.bf16.mxu0 0
        %2415 = vmatpush2.bf16.msra.mxu0 0
        %2416 = vmatprep.subr.bf16.mxu0 0
        %2417 = vmatpush2.bf16.msra.mxu0 0
        %2418 = vmatprep.subr.bf16.mxu0 0
        %2419 = vmatpush2.bf16.msra.mxu0 0
        %2420 = vmatprep.subr.bf16.mxu0 0
        %2421 = vmatpush2.bf16.msra.mxu0 0
        %2422 = vmatprep.mubr.bf16.mxu0 0
        %2423 = vmatmul.mubr.bf16.gmra.mxu0 %v2315
        %v2424 = vpop.f32.mrf.mxu0
        %v2425 = vadd.f32 %v2340, %v2424
        %v2426 = vpop.f32.mrf.mxu0
        %v2427 = vpop.f32.mrf.mxu0
        %v2428 = vadd.f32 %v2340, %v2427
        %v2429 = vpop.f32.mrf.mxu0
        %2430 = vmatprep.mubr.bf16.mxu0 0
        %2431 = vmatmul.mubr.bf16.gmra.mxu0 %v2316
        %v2432 = vpop.f32.mrf.mxu0
        %v2433 = vadd.f32 %v2340, %v2432
        %v2434 = vpop.f32.mrf.mxu0
        %v2435 = vpop.f32.mrf.mxu0
        %v2436 = vadd.f32 %v2340, %v2435
        %v2437 = vpop.f32.mrf.mxu0
        %2438 = vmatprep.mubr.bf16.mxu0 0
        %2439 = vmatmul.mubr.bf16.gmra.mxu0 %v2317
        %v2440 = vpop.f32.mrf.mxu0
        %v2441 = vadd.f32 %v2340, %v2440
        %v2442 = vpop.f32.mrf.mxu0
        %v2443 = vpop.f32.mrf.mxu0
        %v2444 = vadd.f32 %v2340, %v2443
        %v2445 = vpop.f32.mrf.mxu0
        %2446 = vmatprep.mubr.bf16.mxu0 0
        %2447 = vmatmul.mubr.bf16.gmra.mxu0 %v2318
        %v2448 = vpop.f32.mrf.mxu0
        %v2449 = vadd.f32 %v2340, %v2448
        %v2450 = vpop.f32.mrf.mxu0
        %v2451 = vpop.f32.mrf.mxu0
        %v2452 = vadd.f32 %v2340, %v2451
        %v2453 = vpop.f32.mrf.mxu0
        %2454 = vdwg.mxu0
        %v2455 = vadd.f32 %v2028, %v2425
        %v2456 = vadd.f32 %v2029, %v2428
        %v2457 = vadd.f32 %v2030, %v2433
        %v2458 = vadd.f32 %v2031, %v2436
        %v2459 = vadd.f32 %v2032, %v2441
        %v2460 = vadd.f32 %v2033, %v2444
        %v2461 = vadd.f32 %v2034, %v2449
        %v2462 = vadd.f32 %v2035, %v2452
        %2463 = vst.msk [vmem:[%s490] sm:$0xff] %vm1106, %v2455
        %2464 = vst.msk [vmem:[%s490 + $0x8] sm:$0xff] %vm1106, %v2456
        %2465 = vst.msk [vmem:[%s490 + $0x10] sm:$0xff] %vm1106, %v2457
        %2466 = vst.msk [vmem:[%s490 + $0x18] sm:$0xff] %vm1106, %v2458
        %2467 = vst.msk [vmem:[%s490 + $0x20] sm:$0xff] %vm1106, %v2459
        %2468 = vst.msk [vmem:[%s490 + $0x28] sm:$0xff] %vm1106, %v2460
        %2469 = vst.msk [vmem:[%s490 + $0x30] sm:$0xff] %vm1106, %v2461
        %2470 = vst.msk [vmem:[%s490 + $0x38] sm:$0xff] %vm1106, %v2462
        %s2471 = sand.u32 %s354, 1
        %s2472 = scalar_lea.sflag [#allocation8], %s2471
        %s2473 = sand.u32 %s354, 1
        %s2474 = smul.addr %s2473, 64
        %s2475 = scalar_lea.vmem [#allocation7], %s2474
        // Predicated region
        $region88: #{transformer_forward.1} parent=75 // pred_check
          %p2476 = pneg %p364
        $region89: #{transformer_forward.1} parent=75 // pred_check_branch
          %2478 = sbr.rel (%p2476) target = $region91
        $region90: #{transformer_forward.1} parent=75 // pred_region
          %s2479 = smul.u32 8, %s33
          %s2481 = ssub.s32 1024, 1024
          %2482 = vsyncadd %s2472, %s2481
          %s2483 = smul.addr %s32, 8
          %s2484 = sadd.s32 %s2479, %s2483
          %s2485 = smul.addr %s2484, 128
          %s2486 = scalar_lea.hbm %s14, %s2485
          %s2487 = sshll.u32 %s2475, 4
          %s2488 = int_to_ptr.vmem [resolvable:$true] %s2487
          %2493 = dma.vmem_to_hbm [thread:$0]  %s2488, 1024, %s2486, %s2472, 128, 128, 8
        $region91: #{transformer_forward.1} parent=75 // pred_fallthru
          _
      $region76: #{transformer_forward.1} parent=5 // pred_fallthru
        _
      %p2494 = scmp.le.s32.totalorder 2, %s23
      // Predicated region
      $region92: #{transformer_forward.1} parent=5 // pred_check
        %p2495 = pneg %p2494
      $region93: #{transformer_forward.1} parent=5 // pred_check_branch
        %2497 = sbr.rel (%p2495) target = $region95
      $region94: #{transformer_forward.1} parent=5 // pred_region
        %s2498 = ssub.s32 %s23, 2
        // Predicated region
        $region96: #{transformer_forward.1} parent=94 // pred_check
          %p2499 = pneg %p370
        $region97: #{transformer_forward.1} parent=94 // pred_check_branch
          %2501 = sbr.rel (%p2499) target = $region99
        $region98: #{transformer_forward.1} parent=94 // pred_region
          %s2502 = sand.u32 %s355, 1
          %s2503 = scalar_lea.sflag [#allocation8], %s2502
          %s2504 = sand.u32 %s355, 1
          %s2505 = smul.addr %s2504, 64
          %s2506 = scalar_lea.vmem [#allocation7], %s2505
          %2507 = dma.done %s2503, 1024
        $region99: #{transformer_forward.1} parent=94 // pred_fallthru
          _
      $region95: #{transformer_forward.1} parent=5 // pred_fallthru
        _
    $region6: #{transformer_forward.1} parent=1 // loop_footer
      %s27 = sadd.s32 1, %s23
    $region7: #{transformer_forward.1} parent=1 // loop_footer_branch
      %22 = sbr.rel target = $region3
    $region8: #{transformer_forward.1} parent=1 // loop_exit
      _
    %2508 = vsyncpa [#allocation8], 1
    %s2509 = scalar_lea.sflag [#allocation8], 1
    %2510 = vsyncpa %s2509, 1

</llo_original>
